<compile_context>
chip_gen: v7x
topology: tpu7x:2x2x1
jax: 0.10.0
libtpu: 0.0.40
codegen_flags: <defaults>
</compile_context>

<pallas_src>
import jax
import jax.numpy as jnp
from jax.experimental import pallas as pl
from jax.experimental.pallas import tpu as pltpu


def _largest_divisor(n, target):
    """Largest d <= target with n % d == 0 (>= 1)."""
    t = max(1, min(n, target))
    while n % t:
        t -= 1
    return t


def _sigmoid(x):
    # sigmoid(x) == 0.5*tanh(x/2) + 0.5 exactly: one EUP push per gate instead
    # of exp + reciprocal.
    return 0.5 * jnp.tanh(0.5 * x) + 0.5


def _bilstm_block_kernel(gf_ref, gb_ref, whh_hbm_ref,
                         out_f_ref, out_b_ref,
                         whh_vmem, h_sc, c_sc, dma_sem):
    """Fused fwd+bwd LSTM recurrence over one (batch-block, time-block).

    gf_ref      : (T, Bt, 4H)  precomputed fwd gates_in (x@W_ih + b), time
                               block t (ascending time), compute dtype.
    gb_ref      : (T, Bt, 4H)  precomputed bwd gates_in, time block nt-1-t
                               (walked backwards inside the kernel).
    whh_hbm_ref : (2, H, 4H)   recurrent weights in HBM (0 = fwd, 1 = bwd).
    out_f_ref   : (T, Bt, H)   fwd hidden states for time block t.
    out_b_ref   : (T, Bt, H)   bwd hidden states for time block nt-1-t.
    whh_vmem    : (2, H, 4H)   VMEM-resident weight copy (loaded once/b-block).
    h_sc        : (2, Bt, H)   carried hidden state (compute dtype).
    c_sc        : (2, Bt, H)   carried cell state (f32).
    """
    T = gf_ref.shape[0]
    H = whh_vmem.shape[1]

    @pl.when(pl.program_id(1) == 0)
    def _init():
        # Single-buffered weight residency: one DMA per batch block, its
        # latency hidden behind the state zero-init.
        cp = pltpu.make_async_copy(whh_hbm_ref, whh_vmem, dma_sem.at[0])
        cp.start()
        h_sc[...] = jnp.zeros_like(h_sc)
        c_sc[...] = jnp.zeros_like(c_sc)
        cp.wait()

    w_f = whh_vmem[0]              # (H, 4H)
    w_b = whh_vmem[1]              # (H, 4H)

    def cell(gates, c):
        # PyTorch LSTM gate order: i, f, g, o.  All math in f32.
        i_g = _sigmoid(gates[:, 0 * H:1 * H])
        f_g = _sigmoid(gates[:, 1 * H:2 * H])
        g_g = jnp.tanh(gates[:, 2 * H:3 * H])
        o_g = _sigmoid(gates[:, 3 * H:4 * H])
        c_new = f_g * c + i_g * g_g
        h_new = o_g * jnp.tanh(c_new)
        return h_new, c_new

    def step(s, carry):
        # Only the truly serial part runs per timestep: h @ W_hh (+ hoisted
        # x-gates).  Per-direction math — no (2,Bt,4H) stacked temp.
        g_f = gf_ref[s].astype(jnp.float32) + jnp.dot(
            h_sc[0], w_f, preferred_element_type=jnp.float32)
        g_b = gb_ref[T - 1 - s].astype(jnp.float32) + jnp.dot(
            h_sc[1], w_b, preferred_element_type=jnp.float32)

        h_f, c_f = cell(g_f, c_sc[0])
        h_b, c_b = cell(g_b, c_sc[1])

        c_sc[0] = c_f
        c_sc[1] = c_b
        h_sc[0] = h_f.astype(h_sc.dtype)
        h_sc[1] = h_b.astype(h_sc.dtype)

        out_f_ref[s] = h_f.astype(out_f_ref.dtype)
        out_b_ref[T - 1 - s] = h_b.astype(out_b_ref.dtype)
        return carry

    jax.lax.fori_loop(0, T, step, 0, unroll=True)


def _bilstm_layer(x_tm, w_ih_cat, b_cat, w_hh, *, compute_dtype,
                  time_block=16, batch_block=None):
    """One bidirectional LSTM layer over time-major input.

    x_tm     : (S, B, D)
    w_ih_cat : (D, 8H)    [fwd 4H | bwd 4H] input->gate weights (f32 master)
    b_cat    : (8H,)      [fwd 4H | bwd 4H] combined biases (b_ih + b_hh)
    w_hh     : (2, H, 4H) recurrent weights (f32 master)
    returns  : out_fwd (S, B, H), out_bwd (S, B, H) in compute_dtype
    """
    S, B, _ = x_tm.shape
    H = w_hh.shape[1]

    # Hoisted input projection: one big MXU matmul over all timesteps and both
    # directions (compute_dtype operands, f32 accumulation, bias folded in).
    proj = jnp.einsum("sbd,dg->sbg",
                      x_tm.astype(compute_dtype),
                      w_ih_cat.astype(compute_dtype),
                      preferred_element_type=jnp.float32) + b_cat   # (S,B,8H)
    proj = proj.astype(compute_dtype)
    w_hh_c = w_hh.astype(compute_dtype)                             # (2,H,4H)

    # Batch blocking: pad B so Bt can be MXU-shaped (>=128) on real workloads
    # and nb >= 2 for v7x megacore; padding B is semantics-preserving
    # (independent batch rows), padding S would NOT be (backward direction).
    if batch_block is None:
        Bt, B_pad = B, B
    else:
        Bt = int(batch_block)
        B_pad = -(-B // Bt) * Bt
    if B_pad != B:
        proj = jnp.pad(proj, ((0, 0), (0, B_pad - B), (0, 0)))
    nb = B_pad // Bt

    T = _largest_divisor(S, time_block)
    nt = S // T

    # Explicit VMEM budget (default scoped limit is only 16 MiB on v5e):
    # double-buffered gate inputs + outputs + resident scratch, with headroom,
    # capped at 64 MiB so it stays within v7x's physical VMEM.
    itemsize = jnp.dtype(compute_dtype).itemsize
    gate_tile = T * Bt * 4 * H * itemsize
    out_tile = T * Bt * H * itemsize
    scratch_bytes = (2 * H * 4 * H * itemsize      # resident W_hh
                     + 2 * Bt * H * itemsize       # h state
                     + 2 * Bt * H * 4)             # c state (f32)
    needed = 2 * 2 * gate_tile + 2 * 2 * out_tile + scratch_bytes
    vmem_limit = int(min(max(4 * needed, 16 * 1024 * 1024), 64 * 1024 * 1024))

    out_f, out_b = pl.pallas_call(
        _bilstm_block_kernel,
        out_shape=(jax.ShapeDtypeStruct((S, B_pad, H), compute_dtype),
                   jax.ShapeDtypeStruct((S, B_pad, H), compute_dtype)),
        grid_spec=pltpu.PrefetchScalarGridSpec(
            num_scalar_prefetch=0,
            grid=(nb, nt),
            in_specs=[
                # fwd gates_in: column block 0, time block t.
                pl.BlockSpec((T, Bt, 4 * H), lambda b, t: (t, b, 0)),
                # bwd gates_in: column block 1, reversed time block (the time
                # reversal lives in the index_map -> no HBM flip copies).
                pl.BlockSpec((T, Bt, 4 * H), lambda b, t: (nt - 1 - t, b, 1)),
                # Recurrent weights stay in HBM; DMA'd once into VMEM scratch.
                pl.BlockSpec(memory_space=pl.ANY),
            ],
            out_specs=(
                pl.BlockSpec((T, Bt, H), lambda b, t: (t, b, 0)),
                pl.BlockSpec((T, Bt, H), lambda b, t: (nt - 1 - t, b, 0)),
            ),
            scratch_shapes=[
                pltpu.VMEM((2, H, 4 * H), compute_dtype),  # resident weights
                pltpu.VMEM((2, Bt, H), compute_dtype),     # h state (fwd,bwd)
                pltpu.VMEM((2, Bt, H), jnp.float32),       # c state (fwd,bwd)
                pltpu.SemaphoreType.DMA((1,)),
            ],
        ),
        compiler_params=pltpu.CompilerParams(
            dimension_semantics=("parallel", "arbitrary"),
            vmem_limit_bytes=vmem_limit,
        ),
    )(proj, proj, w_hh_c)

    if B_pad != B:
        out_f = out_f[:, :B]
        out_b = out_b[:, :B]
    return out_f, out_b


class StackedBRNN:
    """JAX/Pallas port of the PyTorch StackedBRNN (nn.LSTM, bidirectional)."""

    def __init__(self, input_size, hidden_size, num_layers,
                 dropout_rate=0.0, dropout_output=False, stack_layers=False,
                 time_block=16, batch_block=None,
                 compute_dtype=jnp.bfloat16, key=jax.random.PRNGKey(0)):
        # TODO(synk): F.dropout (training-mode inter-layer / output dropout)
        # is not implemented; eval-mode / dropout_rate=0 semantics only.
        self.num_layers = num_layers
        self.hidden_size = hidden_size
        self.stack_layers = stack_layers
        self.dropout_rate = dropout_rate
        self.dropout_output = dropout_output
        self.time_block = time_block
        self.batch_block = batch_block
        self.compute_dtype = compute_dtype

        H = hidden_size
        stdv = 1.0 / jnp.sqrt(jnp.float32(H))
        self.params = []
        for i in range(num_layers):
            in_dim = input_size if i == 0 else 2 * hidden_size
            w_ih_dirs, w_hh_dirs, b_dirs = [], [], []
            for _ in range(2):                      # fwd, bwd
                key, k1, k2, k3, k4 = jax.random.split(key, 5)
                # PyTorch LSTM params: weight_ih (4H,in), weight_hh (4H,H),
                # bias_ih (4H,), bias_hh (4H,) ~ U(-1/sqrt(H), 1/sqrt(H)).
                w_ih = jax.random.uniform(k1, (4 * H, in_dim), jnp.float32,
                                          -stdv, stdv)
                w_hh = jax.random.uniform(k2, (4 * H, H), jnp.float32,
                                          -stdv, stdv)
                b_ih = jax.random.uniform(k3, (4 * H,), jnp.float32, -stdv, stdv)
                b_hh = jax.random.uniform(k4, (4 * H,), jnp.float32, -stdv, stdv)
                w_ih_dirs.append(jnp.transpose(w_ih))   # (in, 4H)
                w_hh_dirs.append(jnp.transpose(w_hh))   # (H, 4H)
                b_dirs.append(b_ih + b_hh)              # (4H,)
            self.params.append({
                "w_ih": jnp.concatenate(w_ih_dirs, axis=1),   # (in, 8H)
                "w_hh": jnp.stack(w_hh_dirs, axis=0),         # (2, H, 4H)
                "b": jnp.concatenate(b_dirs, axis=0),         # (8H,)
            })

    def __call__(self, x, x_mask):
        """x: (batch, seq, input_size), x_mask: (batch, seq, 1) float."""
        cdt = self.compute_dtype
        x_tm = jnp.transpose(x, (1, 0, 2))              # like x.transpose(0,1)
        mask_tm = jnp.transpose(x_mask, (1, 0, 2)).astype(cdt)

        outputs = [x_tm.astype(cdt)]
        for p in self.params:
            out_f, out_b = _bilstm_layer(
                outputs[-1], p["w_ih"], p["b"], p["w_hh"],
                compute_dtype=cdt,
                time_block=self.time_block, batch_block=self.batch_block)
            # Mask applied once per layer in the wrapper (rnn_output * x_mask);
            # the recurrent state itself stays unmasked, as in the reference.
            outputs.append(jnp.concatenate([out_f, out_b], axis=-1) * mask_tm)

        if self.stack_layers:
            output = jnp.stack(outputs[1:], axis=2)     # (seq, batch, L, 2H)
        else:
            output = outputs[-1]                        # (seq, batch, 2H)
        return jnp.swapaxes(output, 0, 1).astype(x.dtype)   # batch-major


# ----------------------------------------------------------------------------
# Pure-JAX reference (lax.scan, f32) used only for in-script verification.
# ----------------------------------------------------------------------------
def _reference_lstm_direction(x_tm, w_ih, w_hh, b, reverse):
    S, B, _ = x_tm.shape
    H = w_hh.shape[0]

    def step(carry, x_t):
        h, c = carry
        gates = x_t @ w_ih + h @ w_hh + b
        i = jax.nn.sigmoid(gates[:, 0 * H:1 * H])
        f = jax.nn.sigmoid(gates[:, 1 * H:2 * H])
        g = jnp.tanh(gates[:, 2 * H:3 * H])
        o = jax.nn.sigmoid(gates[:, 3 * H:4 * H])
        c = f * c + i * g
        h = o * jnp.tanh(c)
        return (h, c), h

    init = (jnp.zeros((B, H), x_tm.dtype), jnp.zeros((B, H), x_tm.dtype))
    xs = x_tm[::-1] if reverse else x_tm
    _, hs = jax.lax.scan(step, init, xs)
    return hs[::-1] if reverse else hs


def _reference_stacked_brnn(model, x, x_mask):
    H = model.hidden_size
    x_tm = jnp.transpose(x, (1, 0, 2))
    mask_tm = jnp.transpose(x_mask, (1, 0, 2)).astype(x_tm.dtype)
    outputs = [x_tm]
    for p in model.params:
        rnn_in = outputs[-1]
        of = _reference_lstm_direction(rnn_in, p["w_ih"][:, :4 * H],
                                       p["w_hh"][0], p["b"][:4 * H], False)
        ob = _reference_lstm_direction(rnn_in, p["w_ih"][:, 4 * H:],
                                       p["w_hh"][1], p["b"][4 * H:], True)
        outputs.append(jnp.concatenate([of, ob], axis=-1) * mask_tm)
    if model.stack_layers:
        out = jnp.stack(outputs[1:], axis=2)
    else:
        out = outputs[-1]
    return jnp.swapaxes(out, 0, 1)


if __name__ == "__main__":
    batch, seq, input_size, hidden, num_layers = 2, 8, 16, 32, 2

    key = jax.random.PRNGKey(0)
    kx, kp = jax.random.split(key, 2)

    x = jax.random.normal(kx, (batch, seq, input_size), jnp.float32)
    # Binary mask with some padded (zero) tail positions.
    lengths = jnp.array([seq, seq - 3])
    pos = jnp.arange(seq)[None, :]
    x_mask = (pos < lengths[:, None]).astype(jnp.float32)[..., None]  # (B,S,1)

    # time_block=4 -> 2 time blocks per layer: exercises the recurrent-state
    # carry across grid steps and the reversed bwd index_map.
    model = StackedBRNN(input_size, hidden, num_layers, time_block=4,
                        compute_dtype=jnp.float32, key=kp)

    ref = _reference_stacked_brnn(model, x, x_mask)

    # 1) f32 compute path: tight correctness check vs pure-JAX reference.
    out_f32 = jax.block_until_ready(model(x, x_mask))
    assert out_f32.shape == (batch, seq, 2 * hidden), out_f32.shape
    assert bool(jnp.all(jnp.isfinite(out_f32)))
    err_f32 = float(jnp.max(jnp.abs(out_f32 - ref)))
    assert err_f32 < 2e-3, f"f32 mismatch vs pure-JAX reference: {err_f32}"

    # 2) bf16 compute path (the performance configuration): same kernel code,
    #    lower-precision gate stream / weights / h state -> loose tolerance
    #    against the f32 reference.
    model.compute_dtype = jnp.bfloat16
    out_bf16 = jax.block_until_ready(model(x, x_mask))
    assert out_bf16.shape == (batch, seq, 2 * hidden), out_bf16.shape
    assert bool(jnp.all(jnp.isfinite(out_bf16)))
    err_bf16 = float(jnp.max(jnp.abs(out_bf16 - ref)))
    assert err_bf16 < 0.15, f"bf16 mismatch vs pure-JAX reference: {err_bf16}"

    print("KERNEL_OK")
</pallas_src>

<mosaic_0001>
module attributes {stable_mosaic.version = 11 : i64} {
  func.func @_bilstm_block_kernel(%arg0: i32, %arg1: i32, %arg2: memref<4x2x128xf32, #tpu.memory_space<vmem>>, %arg3: memref<4x2x128xf32, #tpu.memory_space<vmem>>, %arg4: memref<2x32x128xf32, #tpu.memory_space<any>>, %arg5: memref<4x2x32xf32, #tpu.memory_space<vmem>>, %arg6: memref<4x2x32xf32, #tpu.memory_space<vmem>>, %arg7: memref<2x32x128xf32, #tpu.memory_space<vmem>>, %arg8: memref<2x2x32xf32, #tpu.memory_space<vmem>>, %arg9: memref<2x2x32xf32, #tpu.memory_space<vmem>>, %arg10: memref<1x!tpu.dma_semaphore, #tpu.memory_space<semaphore_mem>>) attributes {dimension_semantics = [#tpu.dimension_semantics<parallel>, #tpu.dimension_semantics<arbitrary>], iteration_bounds = array<i64: 1, 2>, scalar_prefetch = 0 : i64, scratch_operands = 4 : i64, tpu.core_type = #tpu.core_type<tc>, window_params = [{transform_indices = @transform_0, window_bounds = array<i64: 4, 2, 128>}, {transform_indices = @transform_1, window_bounds = array<i64: 4, 2, 128>}, {}, {transform_indices = @transform_3, window_bounds = array<i64: 4, 2, 32>}, {transform_indices = @transform_4, window_bounds = array<i64: 4, 2, 32>}]} {
    %c0_i32 = arith.constant 0 : i32
    %0 = arith.cmpi eq, %arg1, %c0_i32 : i32
    %1 = arith.extui %0 : i1 to i32
    %c0_i32_0 = arith.constant 0 : i32
    %2 = arith.cmpi ne, %1, %c0_i32_0 : i32
    scf.if %2 {
      %c0_i32_221 = arith.constant 0 : i32
      %415 = tpu.memref_slice %arg10[%c0_i32_221] : memref<1x!tpu.dma_semaphore, #tpu.memory_space<semaphore_mem>> -> memref<1x!tpu.dma_semaphore, #tpu.memory_space<semaphore_mem>>
      %416 = tpu.memref_squeeze %415 : memref<1x!tpu.dma_semaphore, #tpu.memory_space<semaphore_mem>> -> memref<!tpu.dma_semaphore, #tpu.memory_space<semaphore_mem>>
      tpu.enqueue_dma source(%arg4 : memref<2x32x128xf32, #tpu.memory_space<any>>) target(%arg7 : memref<2x32x128xf32, #tpu.memory_space<vmem>>) target_semaphore(%416 : memref<!tpu.dma_semaphore, #tpu.memory_space<semaphore_mem>>)
      %cst_222 = arith.constant 0.000000e+00 : f32
      %417 = vector.broadcast %cst_222 : f32 to vector<2x2x32xf32>
      %c0_223 = arith.constant 0 : index
      %c0_224 = arith.constant 0 : index
      %c0_225 = arith.constant 0 : index
      %418 = vector.load %arg8[%c0_223, %c0_224, %c0_225] : memref<2x2x32xf32, #tpu.memory_space<vmem>>, vector<2x2x32xf32>
      tpu.vector_store %arg8[%c0_223, %c0_224, %c0_225], %417 {strides = array<i32>} : memref<2x2x32xf32, #tpu.memory_space<vmem>>, vector<2x2x32xf32>,
      %cst_226 = arith.constant 0.000000e+00 : f32
      %419 = vector.broadcast %cst_226 : f32 to vector<2x2x32xf32>
      %c0_227 = arith.constant 0 : index
      %c0_228 = arith.constant 0 : index
      %c0_229 = arith.constant 0 : index
      %420 = vector.load %arg9[%c0_227, %c0_228, %c0_229] : memref<2x2x32xf32, #tpu.memory_space<vmem>>, vector<2x2x32xf32>
      tpu.vector_store %arg9[%c0_227, %c0_228, %c0_229], %419 {strides = array<i32>} : memref<2x2x32xf32, #tpu.memory_space<vmem>>, vector<2x2x32xf32>,
      %c0_i32_230 = arith.constant 0 : i32
      %421 = tpu.memref_slice %arg10[%c0_i32_230] : memref<1x!tpu.dma_semaphore, #tpu.memory_space<semaphore_mem>> -> memref<1x!tpu.dma_semaphore, #tpu.memory_space<semaphore_mem>>
      %422 = tpu.memref_squeeze %421 : memref<1x!tpu.dma_semaphore, #tpu.memory_space<semaphore_mem>> -> memref<!tpu.dma_semaphore, #tpu.memory_space<semaphore_mem>>
      tpu.wait_dma2 semaphore(%422 : memref<!tpu.dma_semaphore, #tpu.memory_space<semaphore_mem>>) src(%arg4 : memref<2x32x128xf32, #tpu.memory_space<any>>) dst(%arg7 : memref<2x32x128xf32, #tpu.memory_space<vmem>>)
    } else {
    }
    %c0 = arith.constant 0 : index
    %c0_1 = arith.constant 0 : index
    %c0_2 = arith.constant 0 : index
    %3 = vector.load %arg7[%c0, %c0_1, %c0_2] : memref<2x32x128xf32, #tpu.memory_space<vmem>>, vector<1x32x128xf32>
    %4 = vector.shape_cast %3 : vector<1x32x128xf32> to vector<32x128xf32>
    %c1 = arith.constant 1 : index
    %c0_3 = arith.constant 0 : index
    %c0_4 = arith.constant 0 : index
    %5 = vector.load %arg7[%c1, %c0_3, %c0_4] : memref<2x32x128xf32, #tpu.memory_space<vmem>>, vector<1x32x128xf32>
    %6 = vector.shape_cast %5 : vector<1x32x128xf32> to vector<32x128xf32>
    %c0_i32_5 = arith.constant 0 : i32
    %7 = arith.index_cast %c0_i32_5 : i32 to index
    %c0_6 = arith.constant 0 : index
    %c0_7 = arith.constant 0 : index
    %8 = vector.load %arg2[%7, %c0_6, %c0_7] : memref<4x2x128xf32, #tpu.memory_space<vmem>>, vector<1x2x128xf32>
    %9 = vector.shape_cast %8 : vector<1x2x128xf32> to vector<2x128xf32>
    %c0_8 = arith.constant 0 : index
    %c0_9 = arith.constant 0 : index
    %c0_10 = arith.constant 0 : index
    %10 = vector.load %arg8[%c0_8, %c0_9, %c0_10] : memref<2x2x32xf32, #tpu.memory_space<vmem>>, vector<1x2x32xf32>
    %11 = vector.shape_cast %10 : vector<1x2x32xf32> to vector<2x32xf32>
    %cst = arith.constant dense<0.000000e+00> : vector<2x128xf32>
    %12 = tpu.matmul %11, %4, %cst {dimension_numbers = #tpu.dot_dimension_numbers<[1], [0], [0], [1], [0, 0, 1, 1], [], []>} : vector<2x32xf32>, vector<32x128xf32>, vector<2x128xf32> -> vector<2x128xf32>
    %13 = arith.addf %9, %12 : vector<2x128xf32>
    %c3_i32 = arith.constant 3 : i32
    %14 = arith.subi %c3_i32, %c0_i32_5 : i32
    %15 = arith.index_cast %14 : i32 to index
    %c0_11 = arith.constant 0 : index
    %c0_12 = arith.constant 0 : index
    %16 = vector.load %arg3[%15, %c0_11, %c0_12] : memref<4x2x128xf32, #tpu.memory_space<vmem>>, vector<1x2x128xf32>
    %17 = vector.shape_cast %16 : vector<1x2x128xf32> to vector<2x128xf32>
    %c1_13 = arith.constant 1 : index
    %c0_14 = arith.constant 0 : index
    %c0_15 = arith.constant 0 : index
    %18 = vector.load %arg8[%c1_13, %c0_14, %c0_15] : memref<2x2x32xf32, #tpu.memory_space<vmem>>, vector<1x2x32xf32>
    %19 = vector.shape_cast %18 : vector<1x2x32xf32> to vector<2x32xf32>
    %cst_16 = arith.constant dense<0.000000e+00> : vector<2x128xf32>
    %20 = tpu.matmul %19, %6, %cst_16 {dimension_numbers = #tpu.dot_dimension_numbers<[1], [0], [0], [1], [0, 0, 1, 1], [], []>} : vector<2x32xf32>, vector<32x128xf32>, vector<2x128xf32> -> vector<2x128xf32>
    %21 = arith.addf %17, %20 : vector<2x128xf32>
    %c0_17 = arith.constant 0 : index
    %c0_18 = arith.constant 0 : index
    %c0_19 = arith.constant 0 : index
    %22 = vector.load %arg9[%c0_17, %c0_18, %c0_19] : memref<2x2x32xf32, #tpu.memory_space<vmem>>, vector<1x2x32xf32>
    %23 = vector.shape_cast %22 : vector<1x2x32xf32> to vector<2x32xf32>
    %24 = vector.extract_strided_slice %13 {offsets = [0, 0], sizes = [2, 32], strides = [1, 1]} : vector<2x128xf32> to vector<2x32xf32>
    %cst_20 = arith.constant 5.000000e-01 : f32
    %25 = vector.broadcast %cst_20 : f32 to vector<2x32xf32>
    %26 = arith.mulf %25, %24 : vector<2x32xf32>
    %27 = math.tanh %26 : vector<2x32xf32>
    %cst_21 = arith.constant 5.000000e-01 : f32
    %28 = vector.broadcast %cst_21 : f32 to vector<2x32xf32>
    %29 = arith.mulf %28, %27 : vector<2x32xf32>
    %cst_22 = arith.constant 5.000000e-01 : f32
    %30 = vector.broadcast %cst_22 : f32 to vector<2x32xf32>
    %31 = arith.addf %29, %30 : vector<2x32xf32>
    %32 = vector.extract_strided_slice %13 {offsets = [0, 32], sizes = [2, 32], strides = [1, 1]} : vector<2x128xf32> to vector<2x32xf32>
    %cst_23 = arith.constant 5.000000e-01 : f32
    %33 = vector.broadcast %cst_23 : f32 to vector<2x32xf32>
    %34 = arith.mulf %33, %32 : vector<2x32xf32>
    %35 = math.tanh %34 : vector<2x32xf32>
    %cst_24 = arith.constant 5.000000e-01 : f32
    %36 = vector.broadcast %cst_24 : f32 to vector<2x32xf32>
    %37 = arith.mulf %36, %35 : vector<2x32xf32>
    %cst_25 = arith.constant 5.000000e-01 : f32
    %38 = vector.broadcast %cst_25 : f32 to vector<2x32xf32>
    %39 = arith.addf %37, %38 : vector<2x32xf32>
    %40 = vector.extract_strided_slice %13 {offsets = [0, 64], sizes = [2, 32], strides = [1, 1]} : vector<2x128xf32> to vector<2x32xf32>
    %41 = math.tanh %40 : vector<2x32xf32>
    %42 = vector.extract_strided_slice %13 {offsets = [0, 96], sizes = [2, 32], strides = [1, 1]} : vector<2x128xf32> to vector<2x32xf32>
    %cst_26 = arith.constant 5.000000e-01 : f32
    %43 = vector.broadcast %cst_26 : f32 to vector<2x32xf32>
    %44 = arith.mulf %43, %42 : vector<2x32xf32>
    %45 = math.tanh %44 : vector<2x32xf32>
    %cst_27 = arith.constant 5.000000e-01 : f32
    %46 = vector.broadcast %cst_27 : f32 to vector<2x32xf32>
    %47 = arith.mulf %46, %45 : vector<2x32xf32>
    %cst_28 = arith.constant 5.000000e-01 : f32
    %48 = vector.broadcast %cst_28 : f32 to vector<2x32xf32>
    %49 = arith.addf %47, %48 : vector<2x32xf32>
    %50 = arith.mulf %39, %23 : vector<2x32xf32>
    %51 = arith.mulf %31, %41 : vector<2x32xf32>
    %52 = arith.addf %50, %51 : vector<2x32xf32>
    %53 = math.tanh %52 : vector<2x32xf32>
    %54 = arith.mulf %49, %53 : vector<2x32xf32>
    %c1_29 = arith.constant 1 : index
    %c0_30 = arith.constant 0 : index
    %c0_31 = arith.constant 0 : index
    %55 = vector.load %arg9[%c1_29, %c0_30, %c0_31] : memref<2x2x32xf32, #tpu.memory_space<vmem>>, vector<1x2x32xf32>
    %56 = vector.shape_cast %55 : vector<1x2x32xf32> to vector<2x32xf32>
    %57 = vector.extract_strided_slice %21 {offsets = [0, 0], sizes = [2, 32], strides = [1, 1]} : vector<2x128xf32> to vector<2x32xf32>
    %cst_32 = arith.constant 5.000000e-01 : f32
    %58 = vector.broadcast %cst_32 : f32 to vector<2x32xf32>
    %59 = arith.mulf %58, %57 : vector<2x32xf32>
    %60 = math.tanh %59 : vector<2x32xf32>
    %cst_33 = arith.constant 5.000000e-01 : f32
    %61 = vector.broadcast %cst_33 : f32 to vector<2x32xf32>
    %62 = arith.mulf %61, %60 : vector<2x32xf32>
    %cst_34 = arith.constant 5.000000e-01 : f32
    %63 = vector.broadcast %cst_34 : f32 to vector<2x32xf32>
    %64 = arith.addf %62, %63 : vector<2x32xf32>
    %65 = vector.extract_strided_slice %21 {offsets = [0, 32], sizes = [2, 32], strides = [1, 1]} : vector<2x128xf32> to vector<2x32xf32>
    %cst_35 = arith.constant 5.000000e-01 : f32
    %66 = vector.broadcast %cst_35 : f32 to vector<2x32xf32>
    %67 = arith.mulf %66, %65 : vector<2x32xf32>
    %68 = math.tanh %67 : vector<2x32xf32>
    %cst_36 = arith.constant 5.000000e-01 : f32
    %69 = vector.broadcast %cst_36 : f32 to vector<2x32xf32>
    %70 = arith.mulf %69, %68 : vector<2x32xf32>
    %cst_37 = arith.constant 5.000000e-01 : f32
    %71 = vector.broadcast %cst_37 : f32 to vector<2x32xf32>
    %72 = arith.addf %70, %71 : vector<2x32xf32>
    %73 = vector.extract_strided_slice %21 {offsets = [0, 64], sizes = [2, 32], strides = [1, 1]} : vector<2x128xf32> to vector<2x32xf32>
    %74 = math.tanh %73 : vector<2x32xf32>
    %75 = vector.extract_strided_slice %21 {offsets = [0, 96], sizes = [2, 32], strides = [1, 1]} : vector<2x128xf32> to vector<2x32xf32>
    %cst_38 = arith.constant 5.000000e-01 : f32
    %76 = vector.broadcast %cst_38 : f32 to vector<2x32xf32>
    %77 = arith.mulf %76, %75 : vector<2x32xf32>
    %78 = math.tanh %77 : vector<2x32xf32>
    %cst_39 = arith.constant 5.000000e-01 : f32
    %79 = vector.broadcast %cst_39 : f32 to vector<2x32xf32>
    %80 = arith.mulf %79, %78 : vector<2x32xf32>
    %cst_40 = arith.constant 5.000000e-01 : f32
    %81 = vector.broadcast %cst_40 : f32 to vector<2x32xf32>
    %82 = arith.addf %80, %81 : vector<2x32xf32>
    %83 = arith.mulf %72, %56 : vector<2x32xf32>
    %84 = arith.mulf %64, %74 : vector<2x32xf32>
    %85 = arith.addf %83, %84 : vector<2x32xf32>
    %86 = math.tanh %85 : vector<2x32xf32>
    %87 = arith.mulf %82, %86 : vector<2x32xf32>
    %c0_41 = arith.constant 0 : index
    %c0_42 = arith.constant 0 : index
    %c0_43 = arith.constant 0 : index
    %88 = vector.load %arg9[%c0_41, %c0_42, %c0_43] : memref<2x2x32xf32, #tpu.memory_space<vmem>>, vector<1x2x32xf32>
    %89 = vector.shape_cast %88 : vector<1x2x32xf32> to vector<2x32xf32>
    %90 = vector.shape_cast %52 : vector<2x32xf32> to vector<1x2x32xf32>
    tpu.vector_store %arg9[%c0_41, %c0_42, %c0_43], %90 {strides = array<i32>} : memref<2x2x32xf32, #tpu.memory_space<vmem>>, vector<1x2x32xf32>,
    %c1_44 = arith.constant 1 : index
    %c0_45 = arith.constant 0 : index
    %c0_46 = arith.constant 0 : index
    %91 = vector.load %arg9[%c1_44, %c0_45, %c0_46] : memref<2x2x32xf32, #tpu.memory_space<vmem>>, vector<1x2x32xf32>
    %92 = vector.shape_cast %91 : vector<1x2x32xf32> to vector<2x32xf32>
    %93 = vector.shape_cast %85 : vector<2x32xf32> to vector<1x2x32xf32>
    tpu.vector_store %arg9[%c1_44, %c0_45, %c0_46], %93 {strides = array<i32>} : memref<2x2x32xf32, #tpu.memory_space<vmem>>, vector<1x2x32xf32>,
    %c0_47 = arith.constant 0 : index
    %c0_48 = arith.constant 0 : index
    %c0_49 = arith.constant 0 : index
    %94 = vector.load %arg8[%c0_47, %c0_48, %c0_49] : memref<2x2x32xf32, #tpu.memory_space<vmem>>, vector<1x2x32xf32>
    %95 = vector.shape_cast %94 : vector<1x2x32xf32> to vector<2x32xf32>
    %96 = vector.shape_cast %54 : vector<2x32xf32> to vector<1x2x32xf32>
    tpu.vector_store %arg8[%c0_47, %c0_48, %c0_49], %96 {strides = array<i32>} : memref<2x2x32xf32, #tpu.memory_space<vmem>>, vector<1x2x32xf32>,
    %c1_50 = arith.constant 1 : index
    %c0_51 = arith.constant 0 : index
    %c0_52 = arith.constant 0 : index
    %97 = vector.load %arg8[%c1_50, %c0_51, %c0_52] : memref<2x2x32xf32, #tpu.memory_space<vmem>>, vector<1x2x32xf32>
    %98 = vector.shape_cast %97 : vector<1x2x32xf32> to vector<2x32xf32>
    %99 = vector.shape_cast %87 : vector<2x32xf32> to vector<1x2x32xf32>
    tpu.vector_store %arg8[%c1_50, %c0_51, %c0_52], %99 {strides = array<i32>} : memref<2x2x32xf32, #tpu.memory_space<vmem>>, vector<1x2x32xf32>,
    %100 = arith.index_cast %c0_i32_5 : i32 to index
    %c0_53 = arith.constant 0 : index
    %c0_54 = arith.constant 0 : index
    %101 = vector.load %arg5[%100, %c0_53, %c0_54] : memref<4x2x32xf32, #tpu.memory_space<vmem>>, vector<1x2x32xf32>
    %102 = vector.shape_cast %101 : vector<1x2x32xf32> to vector<2x32xf32>
    %103 = vector.shape_cast %54 : vector<2x32xf32> to vector<1x2x32xf32>
    tpu.vector_store %arg5[%100, %c0_53, %c0_54], %103 {strides = array<i32>} : memref<4x2x32xf32, #tpu.memory_space<vmem>>, vector<1x2x32xf32>,
    %c3_i32_55 = arith.constant 3 : i32
    %104 = arith.subi %c3_i32_55, %c0_i32_5 : i32
    %105 = arith.index_cast %104 : i32 to index
    %c0_56 = arith.constant 0 : index
    %c0_57 = arith.constant 0 : index
    %106 = vector.load %arg6[%105, %c0_56, %c0_57] : memref<4x2x32xf32, #tpu.memory_space<vmem>>, vector<1x2x32xf32>
    %107 = vector.shape_cast %106 : vector<1x2x32xf32> to vector<2x32xf32>
    %108 = vector.shape_cast %87 : vector<2x32xf32> to vector<1x2x32xf32>
    tpu.vector_store %arg6[%105, %c0_56, %c0_57], %108 {strides = array<i32>} : memref<4x2x32xf32, #tpu.memory_space<vmem>>, vector<1x2x32xf32>,
    %c1_i32 = arith.constant 1 : i32
    %109 = arith.index_cast %c1_i32 : i32 to index
    %c0_58 = arith.constant 0 : index
    %c0_59 = arith.constant 0 : index
    %110 = vector.load %arg2[%109, %c0_58, %c0_59] : memref<4x2x128xf32, #tpu.memory_space<vmem>>, vector<1x2x128xf32>
    %111 = vector.shape_cast %110 : vector<1x2x128xf32> to vector<2x128xf32>
    %c0_60 = arith.constant 0 : index
    %c0_61 = arith.constant 0 : index
    %c0_62 = arith.constant 0 : index
    %112 = vector.load %arg8[%c0_60, %c0_61, %c0_62] : memref<2x2x32xf32, #tpu.memory_space<vmem>>, vector<1x2x32xf32>
    %113 = vector.shape_cast %112 : vector<1x2x32xf32> to vector<2x32xf32>
    %cst_63 = arith.constant dense<0.000000e+00> : vector<2x128xf32>
    %114 = tpu.matmul %113, %4, %cst_63 {dimension_numbers = #tpu.dot_dimension_numbers<[1], [0], [0], [1], [0, 0, 1, 1], [], []>} : vector<2x32xf32>, vector<32x128xf32>, vector<2x128xf32> -> vector<2x128xf32>
    %115 = arith.addf %111, %114 : vector<2x128xf32>
    %c3_i32_64 = arith.constant 3 : i32
    %116 = arith.subi %c3_i32_64, %c1_i32 : i32
    %117 = arith.index_cast %116 : i32 to index
    %c0_65 = arith.constant 0 : index
    %c0_66 = arith.constant 0 : index
    %118 = vector.load %arg3[%117, %c0_65, %c0_66] : memref<4x2x128xf32, #tpu.memory_space<vmem>>, vector<1x2x128xf32>
    %119 = vector.shape_cast %118 : vector<1x2x128xf32> to vector<2x128xf32>
    %c1_67 = arith.constant 1 : index
    %c0_68 = arith.constant 0 : index
    %c0_69 = arith.constant 0 : index
    %120 = vector.load %arg8[%c1_67, %c0_68, %c0_69] : memref<2x2x32xf32, #tpu.memory_space<vmem>>, vector<1x2x32xf32>
    %121 = vector.shape_cast %120 : vector<1x2x32xf32> to vector<2x32xf32>
    %cst_70 = arith.constant dense<0.000000e+00> : vector<2x128xf32>
    %122 = tpu.matmul %121, %6, %cst_70 {dimension_numbers = #tpu.dot_dimension_numbers<[1], [0], [0], [1], [0, 0, 1, 1], [], []>} : vector<2x32xf32>, vector<32x128xf32>, vector<2x128xf32> -> vector<2x128xf32>
    %123 = arith.addf %119, %122 : vector<2x128xf32>
    %c0_71 = arith.constant 0 : index
    %c0_72 = arith.constant 0 : index
    %c0_73 = arith.constant 0 : index
    %124 = vector.load %arg9[%c0_71, %c0_72, %c0_73] : memref<2x2x32xf32, #tpu.memory_space<vmem>>, vector<1x2x32xf32>
    %125 = vector.shape_cast %124 : vector<1x2x32xf32> to vector<2x32xf32>
    %126 = vector.extract_strided_slice %115 {offsets = [0, 0], sizes = [2, 32], strides = [1, 1]} : vector<2x128xf32> to vector<2x32xf32>
    %cst_74 = arith.constant 5.000000e-01 : f32
    %127 = vector.broadcast %cst_74 : f32 to vector<2x32xf32>
    %128 = arith.mulf %127, %126 : vector<2x32xf32>
    %129 = math.tanh %128 : vector<2x32xf32>
    %cst_75 = arith.constant 5.000000e-01 : f32
    %130 = vector.broadcast %cst_75 : f32 to vector<2x32xf32>
    %131 = arith.mulf %130, %129 : vector<2x32xf32>
    %cst_76 = arith.constant 5.000000e-01 : f32
    %132 = vector.broadcast %cst_76 : f32 to vector<2x32xf32>
    %133 = arith.addf %131, %132 : vector<2x32xf32>
    %134 = vector.extract_strided_slice %115 {offsets = [0, 32], sizes = [2, 32], strides = [1, 1]} : vector<2x128xf32> to vector<2x32xf32>
    %cst_77 = arith.constant 5.000000e-01 : f32
    %135 = vector.broadcast %cst_77 : f32 to vector<2x32xf32>
    %136 = arith.mulf %135, %134 : vector<2x32xf32>
    %137 = math.tanh %136 : vector<2x32xf32>
    %cst_78 = arith.constant 5.000000e-01 : f32
    %138 = vector.broadcast %cst_78 : f32 to vector<2x32xf32>
    %139 = arith.mulf %138, %137 : vector<2x32xf32>
    %cst_79 = arith.constant 5.000000e-01 : f32
    %140 = vector.broadcast %cst_79 : f32 to vector<2x32xf32>
    %141 = arith.addf %139, %140 : vector<2x32xf32>
    %142 = vector.extract_strided_slice %115 {offsets = [0, 64], sizes = [2, 32], strides = [1, 1]} : vector<2x128xf32> to vector<2x32xf32>
    %143 = math.tanh %142 : vector<2x32xf32>
    %144 = vector.extract_strided_slice %115 {offsets = [0, 96], sizes = [2, 32], strides = [1, 1]} : vector<2x128xf32> to vector<2x32xf32>
    %cst_80 = arith.constant 5.000000e-01 : f32
    %145 = vector.broadcast %cst_80 : f32 to vector<2x32xf32>
    %146 = arith.mulf %145, %144 : vector<2x32xf32>
    %147 = math.tanh %146 : vector<2x32xf32>
    %cst_81 = arith.constant 5.000000e-01 : f32
    %148 = vector.broadcast %cst_81 : f32 to vector<2x32xf32>
    %149 = arith.mulf %148, %147 : vector<2x32xf32>
    %cst_82 = arith.constant 5.000000e-01 : f32
    %150 = vector.broadcast %cst_82 : f32 to vector<2x32xf32>
    %151 = arith.addf %149, %150 : vector<2x32xf32>
    %152 = arith.mulf %141, %125 : vector<2x32xf32>
    %153 = arith.mulf %133, %143 : vector<2x32xf32>
    %154 = arith.addf %152, %153 : vector<2x32xf32>
    %155 = math.tanh %154 : vector<2x32xf32>
    %156 = arith.mulf %151, %155 : vector<2x32xf32>
    %c1_83 = arith.constant 1 : index
    %c0_84 = arith.constant 0 : index
    %c0_85 = arith.constant 0 : index
    %157 = vector.load %arg9[%c1_83, %c0_84, %c0_85] : memref<2x2x32xf32, #tpu.memory_space<vmem>>, vector<1x2x32xf32>
    %158 = vector.shape_cast %157 : vector<1x2x32xf32> to vector<2x32xf32>
    %159 = vector.extract_strided_slice %123 {offsets = [0, 0], sizes = [2, 32], strides = [1, 1]} : vector<2x128xf32> to vector<2x32xf32>
    %cst_86 = arith.constant 5.000000e-01 : f32
    %160 = vector.broadcast %cst_86 : f32 to vector<2x32xf32>
    %161 = arith.mulf %160, %159 : vector<2x32xf32>
    %162 = math.tanh %161 : vector<2x32xf32>
    %cst_87 = arith.constant 5.000000e-01 : f32
    %163 = vector.broadcast %cst_87 : f32 to vector<2x32xf32>
    %164 = arith.mulf %163, %162 : vector<2x32xf32>
    %cst_88 = arith.constant 5.000000e-01 : f32
    %165 = vector.broadcast %cst_88 : f32 to vector<2x32xf32>
    %166 = arith.addf %164, %165 : vector<2x32xf32>
    %167 = vector.extract_strided_slice %123 {offsets = [0, 32], sizes = [2, 32], strides = [1, 1]} : vector<2x128xf32> to vector<2x32xf32>
    %cst_89 = arith.constant 5.000000e-01 : f32
    %168 = vector.broadcast %cst_89 : f32 to vector<2x32xf32>
    %169 = arith.mulf %168, %167 : vector<2x32xf32>
    %170 = math.tanh %169 : vector<2x32xf32>
    %cst_90 = arith.constant 5.000000e-01 : f32
    %171 = vector.broadcast %cst_90 : f32 to vector<2x32xf32>
    %172 = arith.mulf %171, %170 : vector<2x32xf32>
    %cst_91 = arith.constant 5.000000e-01 : f32
    %173 = vector.broadcast %cst_91 : f32 to vector<2x32xf32>
    %174 = arith.addf %172, %173 : vector<2x32xf32>
    %175 = vector.extract_strided_slice %123 {offsets = [0, 64], sizes = [2, 32], strides = [1, 1]} : vector<2x128xf32> to vector<2x32xf32>
    %176 = math.tanh %175 : vector<2x32xf32>
    %177 = vector.extract_strided_slice %123 {offsets = [0, 96], sizes = [2, 32], strides = [1, 1]} : vector<2x128xf32> to vector<2x32xf32>
    %cst_92 = arith.constant 5.000000e-01 : f32
    %178 = vector.broadcast %cst_92 : f32 to vector<2x32xf32>
    %179 = arith.mulf %178, %177 : vector<2x32xf32>
    %180 = math.tanh %179 : vector<2x32xf32>
    %cst_93 = arith.constant 5.000000e-01 : f32
    %181 = vector.broadcast %cst_93 : f32 to vector<2x32xf32>
    %182 = arith.mulf %181, %180 : vector<2x32xf32>
    %cst_94 = arith.constant 5.000000e-01 : f32
    %183 = vector.broadcast %cst_94 : f32 to vector<2x32xf32>
    %184 = arith.addf %182, %183 : vector<2x32xf32>
    %185 = arith.mulf %174, %158 : vector<2x32xf32>
    %186 = arith.mulf %166, %176 : vector<2x32xf32>
    %187 = arith.addf %185, %186 : vector<2x32xf32>
    %188 = math.tanh %187 : vector<2x32xf32>
    %189 = arith.mulf %184, %188 : vector<2x32xf32>
    %c0_95 = arith.constant 0 : index
    %c0_96 = arith.constant 0 : index
    %c0_97 = arith.constant 0 : index
    %190 = vector.load %arg9[%c0_95, %c0_96, %c0_97] : memref<2x2x32xf32, #tpu.memory_space<vmem>>, vector<1x2x32xf32>
    %191 = vector.shape_cast %190 : vector<1x2x32xf32> to vector<2x32xf32>
    %192 = vector.shape_cast %154 : vector<2x32xf32> to vector<1x2x32xf32>
    tpu.vector_store %arg9[%c0_95, %c0_96, %c0_97], %192 {strides = array<i32>} : memref<2x2x32xf32, #tpu.memory_space<vmem>>, vector<1x2x32xf32>,
    %c1_98 = arith.constant 1 : index
    %c0_99 = arith.constant 0 : index
    %c0_100 = arith.constant 0 : index
    %193 = vector.load %arg9[%c1_98, %c0_99, %c0_100] : memref<2x2x32xf32, #tpu.memory_space<vmem>>, vector<1x2x32xf32>
    %194 = vector.shape_cast %193 : vector<1x2x32xf32> to vector<2x32xf32>
    %195 = vector.shape_cast %187 : vector<2x32xf32> to vector<1x2x32xf32>
    tpu.vector_store %arg9[%c1_98, %c0_99, %c0_100], %195 {strides = array<i32>} : memref<2x2x32xf32, #tpu.memory_space<vmem>>, vector<1x2x32xf32>,
    %c0_101 = arith.constant 0 : index
    %c0_102 = arith.constant 0 : index
    %c0_103 = arith.constant 0 : index
    %196 = vector.load %arg8[%c0_101, %c0_102, %c0_103] : memref<2x2x32xf32, #tpu.memory_space<vmem>>, vector<1x2x32xf32>
    %197 = vector.shape_cast %196 : vector<1x2x32xf32> to vector<2x32xf32>
    %198 = vector.shape_cast %156 : vector<2x32xf32> to vector<1x2x32xf32>
    tpu.vector_store %arg8[%c0_101, %c0_102, %c0_103], %198 {strides = array<i32>} : memref<2x2x32xf32, #tpu.memory_space<vmem>>, vector<1x2x32xf32>,
    %c1_104 = arith.constant 1 : index
    %c0_105 = arith.constant 0 : index
    %c0_106 = arith.constant 0 : index
    %199 = vector.load %arg8[%c1_104, %c0_105, %c0_106] : memref<2x2x32xf32, #tpu.memory_space<vmem>>, vector<1x2x32xf32>
    %200 = vector.shape_cast %199 : vector<1x2x32xf32> to vector<2x32xf32>
    %201 = vector.shape_cast %189 : vector<2x32xf32> to vector<1x2x32xf32>
    tpu.vector_store %arg8[%c1_104, %c0_105, %c0_106], %201 {strides = array<i32>} : memref<2x2x32xf32, #tpu.memory_space<vmem>>, vector<1x2x32xf32>,
    %202 = arith.index_cast %c1_i32 : i32 to index
    %c0_107 = arith.constant 0 : index
    %c0_108 = arith.constant 0 : index
    %203 = vector.load %arg5[%202, %c0_107, %c0_108] : memref<4x2x32xf32, #tpu.memory_space<vmem>>, vector<1x2x32xf32>
    %204 = vector.shape_cast %203 : vector<1x2x32xf32> to vector<2x32xf32>
    %205 = vector.shape_cast %156 : vector<2x32xf32> to vector<1x2x32xf32>
    tpu.vector_store %arg5[%202, %c0_107, %c0_108], %205 {strides = array<i32>} : memref<4x2x32xf32, #tpu.memory_space<vmem>>, vector<1x2x32xf32>,
    %c3_i32_109 = arith.constant 3 : i32
    %206 = arith.subi %c3_i32_109, %c1_i32 : i32
    %207 = arith.index_cast %206 : i32 to index
    %c0_110 = arith.constant 0 : index
    %c0_111 = arith.constant 0 : index
    %208 = vector.load %arg6[%207, %c0_110, %c0_111] : memref<4x2x32xf32, #tpu.memory_space<vmem>>, vector<1x2x32xf32>
    %209 = vector.shape_cast %208 : vector<1x2x32xf32> to vector<2x32xf32>
    %210 = vector.shape_cast %189 : vector<2x32xf32> to vector<1x2x32xf32>
    tpu.vector_store %arg6[%207, %c0_110, %c0_111], %210 {strides = array<i32>} : memref<4x2x32xf32, #tpu.memory_space<vmem>>, vector<1x2x32xf32>,
    %c2_i32 = arith.constant 2 : i32
    %211 = arith.index_cast %c2_i32 : i32 to index
    %c0_112 = arith.constant 0 : index
    %c0_113 = arith.constant 0 : index
    %212 = vector.load %arg2[%211, %c0_112, %c0_113] : memref<4x2x128xf32, #tpu.memory_space<vmem>>, vector<1x2x128xf32>
    %213 = vector.shape_cast %212 : vector<1x2x128xf32> to vector<2x128xf32>
    %c0_114 = arith.constant 0 : index
    %c0_115 = arith.constant 0 : index
    %c0_116 = arith.constant 0 : index
    %214 = vector.load %arg8[%c0_114, %c0_115, %c0_116] : memref<2x2x32xf32, #tpu.memory_space<vmem>>, vector<1x2x32xf32>
    %215 = vector.shape_cast %214 : vector<1x2x32xf32> to vector<2x32xf32>
    %cst_117 = arith.constant dense<0.000000e+00> : vector<2x128xf32>
    %216 = tpu.matmul %215, %4, %cst_117 {dimension_numbers = #tpu.dot_dimension_numbers<[1], [0], [0], [1], [0, 0, 1, 1], [], []>} : vector<2x32xf32>, vector<32x128xf32>, vector<2x128xf32> -> vector<2x128xf32>
    %217 = arith.addf %213, %216 : vector<2x128xf32>
    %c3_i32_118 = arith.constant 3 : i32
    %218 = arith.subi %c3_i32_118, %c2_i32 : i32
    %219 = arith.index_cast %218 : i32 to index
    %c0_119 = arith.constant 0 : index
    %c0_120 = arith.constant 0 : index
    %220 = vector.load %arg3[%219, %c0_119, %c0_120] : memref<4x2x128xf32, #tpu.memory_space<vmem>>, vector<1x2x128xf32>
    %221 = vector.shape_cast %220 : vector<1x2x128xf32> to vector<2x128xf32>
    %c1_121 = arith.constant 1 : index
    %c0_122 = arith.constant 0 : index
    %c0_123 = arith.constant 0 : index
    %222 = vector.load %arg8[%c1_121, %c0_122, %c0_123] : memref<2x2x32xf32, #tpu.memory_space<vmem>>, vector<1x2x32xf32>
    %223 = vector.shape_cast %222 : vector<1x2x32xf32> to vector<2x32xf32>
    %cst_124 = arith.constant dense<0.000000e+00> : vector<2x128xf32>
    %224 = tpu.matmul %223, %6, %cst_124 {dimension_numbers = #tpu.dot_dimension_numbers<[1], [0], [0], [1], [0, 0, 1, 1], [], []>} : vector<2x32xf32>, vector<32x128xf32>, vector<2x128xf32> -> vector<2x128xf32>
    %225 = arith.addf %221, %224 : vector<2x128xf32>
    %c0_125 = arith.constant 0 : index
    %c0_126 = arith.constant 0 : index
    %c0_127 = arith.constant 0 : index
    %226 = vector.load %arg9[%c0_125, %c0_126, %c0_127] : memref<2x2x32xf32, #tpu.memory_space<vmem>>, vector<1x2x32xf32>
    %227 = vector.shape_cast %226 : vector<1x2x32xf32> to vector<2x32xf32>
    %228 = vector.extract_strided_slice %217 {offsets = [0, 0], sizes = [2, 32], strides = [1, 1]} : vector<2x128xf32> to vector<2x32xf32>
    %cst_128 = arith.constant 5.000000e-01 : f32
    %229 = vector.broadcast %cst_128 : f32 to vector<2x32xf32>
    %230 = arith.mulf %229, %228 : vector<2x32xf32>
    %231 = math.tanh %230 : vector<2x32xf32>
    %cst_129 = arith.constant 5.000000e-01 : f32
    %232 = vector.broadcast %cst_129 : f32 to vector<2x32xf32>
    %233 = arith.mulf %232, %231 : vector<2x32xf32>
    %cst_130 = arith.constant 5.000000e-01 : f32
    %234 = vector.broadcast %cst_130 : f32 to vector<2x32xf32>
    %235 = arith.addf %233, %234 : vector<2x32xf32>
    %236 = vector.extract_strided_slice %217 {offsets = [0, 32], sizes = [2, 32], strides = [1, 1]} : vector<2x128xf32> to vector<2x32xf32>
    %cst_131 = arith.constant 5.000000e-01 : f32
    %237 = vector.broadcast %cst_131 : f32 to vector<2x32xf32>
    %238 = arith.mulf %237, %236 : vector<2x32xf32>
    %239 = math.tanh %238 : vector<2x32xf32>
    %cst_132 = arith.constant 5.000000e-01 : f32
    %240 = vector.broadcast %cst_132 : f32 to vector<2x32xf32>
    %241 = arith.mulf %240, %239 : vector<2x32xf32>
    %cst_133 = arith.constant 5.000000e-01 : f32
    %242 = vector.broadcast %cst_133 : f32 to vector<2x32xf32>
    %243 = arith.addf %241, %242 : vector<2x32xf32>
    %244 = vector.extract_strided_slice %217 {offsets = [0, 64], sizes = [2, 32], strides = [1, 1]} : vector<2x128xf32> to vector<2x32xf32>
    %245 = math.tanh %244 : vector<2x32xf32>
    %246 = vector.extract_strided_slice %217 {offsets = [0, 96], sizes = [2, 32], strides = [1, 1]} : vector<2x128xf32> to vector<2x32xf32>
    %cst_134 = arith.constant 5.000000e-01 : f32
    %247 = vector.broadcast %cst_134 : f32 to vector<2x32xf32>
    %248 = arith.mulf %247, %246 : vector<2x32xf32>
    %249 = math.tanh %248 : vector<2x32xf32>
    %cst_135 = arith.constant 5.000000e-01 : f32
    %250 = vector.broadcast %cst_135 : f32 to vector<2x32xf32>
    %251 = arith.mulf %250, %249 : vector<2x32xf32>
    %cst_136 = arith.constant 5.000000e-01 : f32
    %252 = vector.broadcast %cst_136 : f32 to vector<2x32xf32>
    %253 = arith.addf %251, %252 : vector<2x32xf32>
    %254 = arith.mulf %243, %227 : vector<2x32xf32>
    %255 = arith.mulf %235, %245 : vector<2x32xf32>
    %256 = arith.addf %254, %255 : vector<2x32xf32>
    %257 = math.tanh %256 : vector<2x32xf32>
    %258 = arith.mulf %253, %257 : vector<2x32xf32>
    %c1_137 = arith.constant 1 : index
    %c0_138 = arith.constant 0 : index
    %c0_139 = arith.constant 0 : index
    %259 = vector.load %arg9[%c1_137, %c0_138, %c0_139] : memref<2x2x32xf32, #tpu.memory_space<vmem>>, vector<1x2x32xf32>
    %260 = vector.shape_cast %259 : vector<1x2x32xf32> to vector<2x32xf32>
    %261 = vector.extract_strided_slice %225 {offsets = [0, 0], sizes = [2, 32], strides = [1, 1]} : vector<2x128xf32> to vector<2x32xf32>
    %cst_140 = arith.constant 5.000000e-01 : f32
    %262 = vector.broadcast %cst_140 : f32 to vector<2x32xf32>
    %263 = arith.mulf %262, %261 : vector<2x32xf32>
    %264 = math.tanh %263 : vector<2x32xf32>
    %cst_141 = arith.constant 5.000000e-01 : f32
    %265 = vector.broadcast %cst_141 : f32 to vector<2x32xf32>
    %266 = arith.mulf %265, %264 : vector<2x32xf32>
    %cst_142 = arith.constant 5.000000e-01 : f32
    %267 = vector.broadcast %cst_142 : f32 to vector<2x32xf32>
    %268 = arith.addf %266, %267 : vector<2x32xf32>
    %269 = vector.extract_strided_slice %225 {offsets = [0, 32], sizes = [2, 32], strides = [1, 1]} : vector<2x128xf32> to vector<2x32xf32>
    %cst_143 = arith.constant 5.000000e-01 : f32
    %270 = vector.broadcast %cst_143 : f32 to vector<2x32xf32>
    %271 = arith.mulf %270, %269 : vector<2x32xf32>
    %272 = math.tanh %271 : vector<2x32xf32>
    %cst_144 = arith.constant 5.000000e-01 : f32
    %273 = vector.broadcast %cst_144 : f32 to vector<2x32xf32>
    %274 = arith.mulf %273, %272 : vector<2x32xf32>
    %cst_145 = arith.constant 5.000000e-01 : f32
    %275 = vector.broadcast %cst_145 : f32 to vector<2x32xf32>
    %276 = arith.addf %274, %275 : vector<2x32xf32>
    %277 = vector.extract_strided_slice %225 {offsets = [0, 64], sizes = [2, 32], strides = [1, 1]} : vector<2x128xf32> to vector<2x32xf32>
    %278 = math.tanh %277 : vector<2x32xf32>
    %279 = vector.extract_strided_slice %225 {offsets = [0, 96], sizes = [2, 32], strides = [1, 1]} : vector<2x128xf32> to vector<2x32xf32>
    %cst_146 = arith.constant 5.000000e-01 : f32
    %280 = vector.broadcast %cst_146 : f32 to vector<2x32xf32>
    %281 = arith.mulf %280, %279 : vector<2x32xf32>
    %282 = math.tanh %281 : vector<2x32xf32>
    %cst_147 = arith.constant 5.000000e-01 : f32
    %283 = vector.broadcast %cst_147 : f32 to vector<2x32xf32>
    %284 = arith.mulf %283, %282 : vector<2x32xf32>
    %cst_148 = arith.constant 5.000000e-01 : f32
    %285 = vector.broadcast %cst_148 : f32 to vector<2x32xf32>
    %286 = arith.addf %284, %285 : vector<2x32xf32>
    %287 = arith.mulf %276, %260 : vector<2x32xf32>
    %288 = arith.mulf %268, %278 : vector<2x32xf32>
    %289 = arith.addf %287, %288 : vector<2x32xf32>
    %290 = math.tanh %289 : vector<2x32xf32>
    %291 = arith.mulf %286, %290 : vector<2x32xf32>
    %c0_149 = arith.constant 0 : index
    %c0_150 = arith.constant 0 : index
    %c0_151 = arith.constant 0 : index
    %292 = vector.load %arg9[%c0_149, %c0_150, %c0_151] : memref<2x2x32xf32, #tpu.memory_space<vmem>>, vector<1x2x32xf32>
    %293 = vector.shape_cast %292 : vector<1x2x32xf32> to vector<2x32xf32>
    %294 = vector.shape_cast %256 : vector<2x32xf32> to vector<1x2x32xf32>
    tpu.vector_store %arg9[%c0_149, %c0_150, %c0_151], %294 {strides = array<i32>} : memref<2x2x32xf32, #tpu.memory_space<vmem>>, vector<1x2x32xf32>,
    %c1_152 = arith.constant 1 : index
    %c0_153 = arith.constant 0 : index
    %c0_154 = arith.constant 0 : index
    %295 = vector.load %arg9[%c1_152, %c0_153, %c0_154] : memref<2x2x32xf32, #tpu.memory_space<vmem>>, vector<1x2x32xf32>
    %296 = vector.shape_cast %295 : vector<1x2x32xf32> to vector<2x32xf32>
    %297 = vector.shape_cast %289 : vector<2x32xf32> to vector<1x2x32xf32>
    tpu.vector_store %arg9[%c1_152, %c0_153, %c0_154], %297 {strides = array<i32>} : memref<2x2x32xf32, #tpu.memory_space<vmem>>, vector<1x2x32xf32>,
    %c0_155 = arith.constant 0 : index
    %c0_156 = arith.constant 0 : index
    %c0_157 = arith.constant 0 : index
    %298 = vector.load %arg8[%c0_155, %c0_156, %c0_157] : memref<2x2x32xf32, #tpu.memory_space<vmem>>, vector<1x2x32xf32>
    %299 = vector.shape_cast %298 : vector<1x2x32xf32> to vector<2x32xf32>
    %300 = vector.shape_cast %258 : vector<2x32xf32> to vector<1x2x32xf32>
    tpu.vector_store %arg8[%c0_155, %c0_156, %c0_157], %300 {strides = array<i32>} : memref<2x2x32xf32, #tpu.memory_space<vmem>>, vector<1x2x32xf32>,
    %c1_158 = arith.constant 1 : index
    %c0_159 = arith.constant 0 : index
    %c0_160 = arith.constant 0 : index
    %301 = vector.load %arg8[%c1_158, %c0_159, %c0_160] : memref<2x2x32xf32, #tpu.memory_space<vmem>>, vector<1x2x32xf32>
    %302 = vector.shape_cast %301 : vector<1x2x32xf32> to vector<2x32xf32>
    %303 = vector.shape_cast %291 : vector<2x32xf32> to vector<1x2x32xf32>
    tpu.vector_store %arg8[%c1_158, %c0_159, %c0_160], %303 {strides = array<i32>} : memref<2x2x32xf32, #tpu.memory_space<vmem>>, vector<1x2x32xf32>,
    %304 = arith.index_cast %c2_i32 : i32 to index
    %c0_161 = arith.constant 0 : index
    %c0_162 = arith.constant 0 : index
    %305 = vector.load %arg5[%304, %c0_161, %c0_162] : memref<4x2x32xf32, #tpu.memory_space<vmem>>, vector<1x2x32xf32>
    %306 = vector.shape_cast %305 : vector<1x2x32xf32> to vector<2x32xf32>
    %307 = vector.shape_cast %258 : vector<2x32xf32> to vector<1x2x32xf32>
    tpu.vector_store %arg5[%304, %c0_161, %c0_162], %307 {strides = array<i32>} : memref<4x2x32xf32, #tpu.memory_space<vmem>>, vector<1x2x32xf32>,
    %c3_i32_163 = arith.constant 3 : i32
    %308 = arith.subi %c3_i32_163, %c2_i32 : i32
    %309 = arith.index_cast %308 : i32 to index
    %c0_164 = arith.constant 0 : index
    %c0_165 = arith.constant 0 : index
    %310 = vector.load %arg6[%309, %c0_164, %c0_165] : memref<4x2x32xf32, #tpu.memory_space<vmem>>, vector<1x2x32xf32>
    %311 = vector.shape_cast %310 : vector<1x2x32xf32> to vector<2x32xf32>
    %312 = vector.shape_cast %291 : vector<2x32xf32> to vector<1x2x32xf32>
    tpu.vector_store %arg6[%309, %c0_164, %c0_165], %312 {strides = array<i32>} : memref<4x2x32xf32, #tpu.memory_space<vmem>>, vector<1x2x32xf32>,
    %c3_i32_166 = arith.constant 3 : i32
    %313 = arith.index_cast %c3_i32_166 : i32 to index
    %c0_167 = arith.constant 0 : index
    %c0_168 = arith.constant 0 : index
    %314 = vector.load %arg2[%313, %c0_167, %c0_168] : memref<4x2x128xf32, #tpu.memory_space<vmem>>, vector<1x2x128xf32>
    %315 = vector.shape_cast %314 : vector<1x2x128xf32> to vector<2x128xf32>
    %c0_169 = arith.constant 0 : index
    %c0_170 = arith.constant 0 : index
    %c0_171 = arith.constant 0 : index
    %316 = vector.load %arg8[%c0_169, %c0_170, %c0_171] : memref<2x2x32xf32, #tpu.memory_space<vmem>>, vector<1x2x32xf32>
    %317 = vector.shape_cast %316 : vector<1x2x32xf32> to vector<2x32xf32>
    %cst_172 = arith.constant dense<0.000000e+00> : vector<2x128xf32>
    %318 = tpu.matmul %317, %4, %cst_172 {dimension_numbers = #tpu.dot_dimension_numbers<[1], [0], [0], [1], [0, 0, 1, 1], [], []>} : vector<2x32xf32>, vector<32x128xf32>, vector<2x128xf32> -> vector<2x128xf32>
    %319 = arith.addf %315, %318 : vector<2x128xf32>
    %c3_i32_173 = arith.constant 3 : i32
    %320 = arith.subi %c3_i32_173, %c3_i32_166 : i32
    %321 = arith.index_cast %320 : i32 to index
    %c0_174 = arith.constant 0 : index
    %c0_175 = arith.constant 0 : index
    %322 = vector.load %arg3[%321, %c0_174, %c0_175] : memref<4x2x128xf32, #tpu.memory_space<vmem>>, vector<1x2x128xf32>
    %323 = vector.shape_cast %322 : vector<1x2x128xf32> to vector<2x128xf32>
    %c1_176 = arith.constant 1 : index
    %c0_177 = arith.constant 0 : index
    %c0_178 = arith.constant 0 : index
    %324 = vector.load %arg8[%c1_176, %c0_177, %c0_178] : memref<2x2x32xf32, #tpu.memory_space<vmem>>, vector<1x2x32xf32>
    %325 = vector.shape_cast %324 : vector<1x2x32xf32> to vector<2x32xf32>
    %cst_179 = arith.constant dense<0.000000e+00> : vector<2x128xf32>
    %326 = tpu.matmul %325, %6, %cst_179 {dimension_numbers = #tpu.dot_dimension_numbers<[1], [0], [0], [1], [0, 0, 1, 1], [], []>} : vector<2x32xf32>, vector<32x128xf32>, vector<2x128xf32> -> vector<2x128xf32>
    %327 = arith.addf %323, %326 : vector<2x128xf32>
    %c0_180 = arith.constant 0 : index
    %c0_181 = arith.constant 0 : index
    %c0_182 = arith.constant 0 : index
    %328 = vector.load %arg9[%c0_180, %c0_181, %c0_182] : memref<2x2x32xf32, #tpu.memory_space<vmem>>, vector<1x2x32xf32>
    %329 = vector.shape_cast %328 : vector<1x2x32xf32> to vector<2x32xf32>
    %330 = vector.extract_strided_slice %319 {offsets = [0, 0], sizes = [2, 32], strides = [1, 1]} : vector<2x128xf32> to vector<2x32xf32>
    %cst_183 = arith.constant 5.000000e-01 : f32
    %331 = vector.broadcast %cst_183 : f32 to vector<2x32xf32>
    %332 = arith.mulf %331, %330 : vector<2x32xf32>
    %333 = math.tanh %332 : vector<2x32xf32>
    %cst_184 = arith.constant 5.000000e-01 : f32
    %334 = vector.broadcast %cst_184 : f32 to vector<2x32xf32>
    %335 = arith.mulf %334, %333 : vector<2x32xf32>
    %cst_185 = arith.constant 5.000000e-01 : f32
    %336 = vector.broadcast %cst_185 : f32 to vector<2x32xf32>
    %337 = arith.addf %335, %336 : vector<2x32xf32>
    %338 = vector.extract_strided_slice %319 {offsets = [0, 32], sizes = [2, 32], strides = [1, 1]} : vector<2x128xf32> to vector<2x32xf32>
    %cst_186 = arith.constant 5.000000e-01 : f32
    %339 = vector.broadcast %cst_186 : f32 to vector<2x32xf32>
    %340 = arith.mulf %339, %338 : vector<2x32xf32>
    %341 = math.tanh %340 : vector<2x32xf32>
    %cst_187 = arith.constant 5.000000e-01 : f32
    %342 = vector.broadcast %cst_187 : f32 to vector<2x32xf32>
    %343 = arith.mulf %342, %341 : vector<2x32xf32>
    %cst_188 = arith.constant 5.000000e-01 : f32
    %344 = vector.broadcast %cst_188 : f32 to vector<2x32xf32>
    %345 = arith.addf %343, %344 : vector<2x32xf32>
    %346 = vector.extract_strided_slice %319 {offsets = [0, 64], sizes = [2, 32], strides = [1, 1]} : vector<2x128xf32> to vector<2x32xf32>
    %347 = math.tanh %346 : vector<2x32xf32>
    %348 = vector.extract_strided_slice %319 {offsets = [0, 96], sizes = [2, 32], strides = [1, 1]} : vector<2x128xf32> to vector<2x32xf32>
    %cst_189 = arith.constant 5.000000e-01 : f32
    %349 = vector.broadcast %cst_189 : f32 to vector<2x32xf32>
    %350 = arith.mulf %349, %348 : vector<2x32xf32>
    %351 = math.tanh %350 : vector<2x32xf32>
    %cst_190 = arith.constant 5.000000e-01 : f32
    %352 = vector.broadcast %cst_190 : f32 to vector<2x32xf32>
    %353 = arith.mulf %352, %351 : vector<2x32xf32>
    %cst_191 = arith.constant 5.000000e-01 : f32
    %354 = vector.broadcast %cst_191 : f32 to vector<2x32xf32>
    %355 = arith.addf %353, %354 : vector<2x32xf32>
    %356 = arith.mulf %345, %329 : vector<2x32xf32>
    %357 = arith.mulf %337, %347 : vector<2x32xf32>
    %358 = arith.addf %356, %357 : vector<2x32xf32>
    %359 = math.tanh %358 : vector<2x32xf32>
    %360 = arith.mulf %355, %359 : vector<2x32xf32>
    %c1_192 = arith.constant 1 : index
    %c0_193 = arith.constant 0 : index
    %c0_194 = arith.constant 0 : index
    %361 = vector.load %arg9[%c1_192, %c0_193, %c0_194] : memref<2x2x32xf32, #tpu.memory_space<vmem>>, vector<1x2x32xf32>
    %362 = vector.shape_cast %361 : vector<1x2x32xf32> to vector<2x32xf32>
    %363 = vector.extract_strided_slice %327 {offsets = [0, 0], sizes = [2, 32], strides = [1, 1]} : vector<2x128xf32> to vector<2x32xf32>
    %cst_195 = arith.constant 5.000000e-01 : f32
    %364 = vector.broadcast %cst_195 : f32 to vector<2x32xf32>
    %365 = arith.mulf %364, %363 : vector<2x32xf32>
    %366 = math.tanh %365 : vector<2x32xf32>
    %cst_196 = arith.constant 5.000000e-01 : f32
    %367 = vector.broadcast %cst_196 : f32 to vector<2x32xf32>
    %368 = arith.mulf %367, %366 : vector<2x32xf32>
    %cst_197 = arith.constant 5.000000e-01 : f32
    %369 = vector.broadcast %cst_197 : f32 to vector<2x32xf32>
    %370 = arith.addf %368, %369 : vector<2x32xf32>
    %371 = vector.extract_strided_slice %327 {offsets = [0, 32], sizes = [2, 32], strides = [1, 1]} : vector<2x128xf32> to vector<2x32xf32>
    %cst_198 = arith.constant 5.000000e-01 : f32
    %372 = vector.broadcast %cst_198 : f32 to vector<2x32xf32>
    %373 = arith.mulf %372, %371 : vector<2x32xf32>
    %374 = math.tanh %373 : vector<2x32xf32>
    %cst_199 = arith.constant 5.000000e-01 : f32
    %375 = vector.broadcast %cst_199 : f32 to vector<2x32xf32>
    %376 = arith.mulf %375, %374 : vector<2x32xf32>
    %cst_200 = arith.constant 5.000000e-01 : f32
    %377 = vector.broadcast %cst_200 : f32 to vector<2x32xf32>
    %378 = arith.addf %376, %377 : vector<2x32xf32>
    %379 = vector.extract_strided_slice %327 {offsets = [0, 64], sizes = [2, 32], strides = [1, 1]} : vector<2x128xf32> to vector<2x32xf32>
    %380 = math.tanh %379 : vector<2x32xf32>
    %381 = vector.extract_strided_slice %327 {offsets = [0, 96], sizes = [2, 32], strides = [1, 1]} : vector<2x128xf32> to vector<2x32xf32>
    %cst_201 = arith.constant 5.000000e-01 : f32
    %382 = vector.broadcast %cst_201 : f32 to vector<2x32xf32>
    %383 = arith.mulf %382, %381 : vector<2x32xf32>
    %384 = math.tanh %383 : vector<2x32xf32>
    %cst_202 = arith.constant 5.000000e-01 : f32
    %385 = vector.broadcast %cst_202 : f32 to vector<2x32xf32>
    %386 = arith.mulf %385, %384 : vector<2x32xf32>
    %cst_203 = arith.constant 5.000000e-01 : f32
    %387 = vector.broadcast %cst_203 : f32 to vector<2x32xf32>
    %388 = arith.addf %386, %387 : vector<2x32xf32>
    %389 = arith.mulf %378, %362 : vector<2x32xf32>
    %390 = arith.mulf %370, %380 : vector<2x32xf32>
    %391 = arith.addf %389, %390 : vector<2x32xf32>
    %392 = math.tanh %391 : vector<2x32xf32>
    %393 = arith.mulf %388, %392 : vector<2x32xf32>
    %c0_204 = arith.constant 0 : index
    %c0_205 = arith.constant 0 : index
    %c0_206 = arith.constant 0 : index
    %394 = vector.load %arg9[%c0_204, %c0_205, %c0_206] : memref<2x2x32xf32, #tpu.memory_space<vmem>>, vector<1x2x32xf32>
    %395 = vector.shape_cast %394 : vector<1x2x32xf32> to vector<2x32xf32>
    %396 = vector.shape_cast %358 : vector<2x32xf32> to vector<1x2x32xf32>
    tpu.vector_store %arg9[%c0_204, %c0_205, %c0_206], %396 {strides = array<i32>} : memref<2x2x32xf32, #tpu.memory_space<vmem>>, vector<1x2x32xf32>,
    %c1_207 = arith.constant 1 : index
    %c0_208 = arith.constant 0 : index
    %c0_209 = arith.constant 0 : index
    %397 = vector.load %arg9[%c1_207, %c0_208, %c0_209] : memref<2x2x32xf32, #tpu.memory_space<vmem>>, vector<1x2x32xf32>
    %398 = vector.shape_cast %397 : vector<1x2x32xf32> to vector<2x32xf32>
    %399 = vector.shape_cast %391 : vector<2x32xf32> to vector<1x2x32xf32>
    tpu.vector_store %arg9[%c1_207, %c0_208, %c0_209], %399 {strides = array<i32>} : memref<2x2x32xf32, #tpu.memory_space<vmem>>, vector<1x2x32xf32>,
    %c0_210 = arith.constant 0 : index
    %c0_211 = arith.constant 0 : index
    %c0_212 = arith.constant 0 : index
    %400 = vector.load %arg8[%c0_210, %c0_211, %c0_212] : memref<2x2x32xf32, #tpu.memory_space<vmem>>, vector<1x2x32xf32>
    %401 = vector.shape_cast %400 : vector<1x2x32xf32> to vector<2x32xf32>
    %402 = vector.shape_cast %360 : vector<2x32xf32> to vector<1x2x32xf32>
    tpu.vector_store %arg8[%c0_210, %c0_211, %c0_212], %402 {strides = array<i32>} : memref<2x2x32xf32, #tpu.memory_space<vmem>>, vector<1x2x32xf32>,
    %c1_213 = arith.constant 1 : index
    %c0_214 = arith.constant 0 : index
    %c0_215 = arith.constant 0 : index
    %403 = vector.load %arg8[%c1_213, %c0_214, %c0_215] : memref<2x2x32xf32, #tpu.memory_space<vmem>>, vector<1x2x32xf32>
    %404 = vector.shape_cast %403 : vector<1x2x32xf32> to vector<2x32xf32>
    %405 = vector.shape_cast %393 : vector<2x32xf32> to vector<1x2x32xf32>
    tpu.vector_store %arg8[%c1_213, %c0_214, %c0_215], %405 {strides = array<i32>} : memref<2x2x32xf32, #tpu.memory_space<vmem>>, vector<1x2x32xf32>,
    %406 = arith.index_cast %c3_i32_166 : i32 to index
    %c0_216 = arith.constant 0 : index
    %c0_217 = arith.constant 0 : index
    %407 = vector.load %arg5[%406, %c0_216, %c0_217] : memref<4x2x32xf32, #tpu.memory_space<vmem>>, vector<1x2x32xf32>
    %408 = vector.shape_cast %407 : vector<1x2x32xf32> to vector<2x32xf32>
    %409 = vector.shape_cast %360 : vector<2x32xf32> to vector<1x2x32xf32>
    tpu.vector_store %arg5[%406, %c0_216, %c0_217], %409 {strides = array<i32>} : memref<4x2x32xf32, #tpu.memory_space<vmem>>, vector<1x2x32xf32>,
    %c3_i32_218 = arith.constant 3 : i32
    %410 = arith.subi %c3_i32_218, %c3_i32_166 : i32
    %411 = arith.index_cast %410 : i32 to index
    %c0_219 = arith.constant 0 : index
    %c0_220 = arith.constant 0 : index
    %412 = vector.load %arg6[%411, %c0_219, %c0_220] : memref<4x2x32xf32, #tpu.memory_space<vmem>>, vector<1x2x32xf32>
    %413 = vector.shape_cast %412 : vector<1x2x32xf32> to vector<2x32xf32>
    %414 = vector.shape_cast %393 : vector<2x32xf32> to vector<1x2x32xf32>
    tpu.vector_store %arg6[%411, %c0_219, %c0_220], %414 {strides = array<i32>} : memref<4x2x32xf32, #tpu.memory_space<vmem>>, vector<1x2x32xf32>,
    %c4_i32 = arith.constant 4 : i32
    return
  }
  func.func @transform_0(%arg0: i32, %arg1: i32) -> (i32, i32, i32) {
    %c0_i32 = arith.constant 0 : i32
    %c0_i32_0 = arith.constant 0 : i32
    return %arg1, %arg0, %c0_i32 : i32, i32, i32
  }
  func.func @transform_1(%arg0: i32, %arg1: i32) -> (i32, i32, i32) {
    %c1_i32 = arith.constant 1 : i32
    %0 = arith.subi %c1_i32, %arg1 : i32
    %c1_i32_0 = arith.constant 1 : i32
    %c0_i32 = arith.constant 0 : i32
    return %0, %arg0, %c1_i32_0 : i32, i32, i32
  }
  func.func @transform_3(%arg0: i32, %arg1: i32) -> (i32, i32, i32) {
    %c0_i32 = arith.constant 0 : i32
    %c0_i32_0 = arith.constant 0 : i32
    return %arg1, %arg0, %c0_i32 : i32, i32, i32
  }
  func.func @transform_4(%arg0: i32, %arg1: i32) -> (i32, i32, i32) {
    %c1_i32 = arith.constant 1 : i32
    %0 = arith.subi %c1_i32, %arg1 : i32
    %c0_i32 = arith.constant 0 : i32
    %c0_i32_0 = arith.constant 0 : i32
    return %0, %arg0, %c0_i32 : i32, i32, i32
  }
}

</mosaic_0001>

<llo_original>
// kernel: tpu_custom_call.1
$region0: #{tpu_custom_call.1}
  #allocation0 [shape = 'u32[]', space=smem, size = 0x4, offset = 0x4, fixed_abs, tag = 'smem constant byte address 0x4 - core index']
  #allocation1 [shape = 'u32[144,128]{1,0:T(1,128)}', space=vmem, size = 0x12000, scoped, tag = 'internal scratch']
  #allocation2 [shape = 'f32[2,32,128]{2,1,0:T(8,128)}', space=vmem, size = 0x8000, scoped, tag = 'scratch operand']
  #allocation3 [shape = 'f32[2,2,32]{2,1,0:T(2,128)}', space=vmem, size = 0x800, scoped, tag = 'scratch operand']
  #allocation4 [shape = 'f32[2,2,32]{2,1,0:T(2,128)}', space=vmem, size = 0x800, scoped, tag = 'scratch operand']
  #allocation5 [shape = 's32[1]{0}', space=sflag, size = 0x4, scoped, tag = 'scratch operand']
  #allocation14 [shape = 's32[]', space=sflag, size = 0x4, offset = 0, fixed_abs, tag = 'sflag constant byte address 0x0 - dummy sync flag']
  #allocation15 [shape = 's32[]', space=sflag, size = 0x4, offset = 0, fixed_abs, tag = 'sflag constant byte address 0x0 - dummy sync flag']
  #allocation16 [shape = 'u32[]', space=smem, size = 0x4, offset = 0x44, fixed_abs, tag = 'smem constant byte address 0x44 - assertion arg 0']
  #allocation17 [shape = 'u32[]', space=smem, size = 0x4, offset = 0x48, fixed_abs, tag = 'smem constant byte address 0x48 - assertion arg 1']
  %s0 = inlined_call_operand.hbm [shape: f32[8,2,256], index: 0, kind: input, shape index: {}]
  %s1 = inlined_call_operand.hbm [shape: f32[8,2,256], index: 1, kind: input, shape index: {}]
  %s2 = inlined_call_operand.hbm [shape: f32[2,32,128], index: 2, kind: input, shape index: {}]
  %s3 = inlined_call_operand.hbm [shape: f32[8,2,32], index: 3, kind: output, shape index: {0}]
  %s4 = inlined_call_operand.hbm [shape: f32[8,2,32], index: 4, kind: output, shape index: {1}]
  %5 = xla_tuple %s3, %s4
  %s6 = sld [smem:[#allocation0]]
  $region65: #{tpu_custom_call.1} parent=0
    _
  %s8 = ssub.s32 1, %s6
  %s9 = scalar_select 0, %s8, %s6
  $region1: #{tpu_custom_call.1} parent=0
    #allocation6 [shape = 'u8[8192]{0}', space=vmem, size = 0x2000, scoped, tag = 'input window, operand 0']
    #allocation7 [shape = 's32[2]{0}', space=sflag, size = 0x8, scoped, tag = 'scoped memory for tpu_custom_call.1']
    #allocation8 [shape = 's32[2]{0}', space=sflag, size = 0x8, scoped, tag = 'scoped memory for tpu_custom_call.1']
    #allocation9 [shape = 'u8[8192]{0}', space=vmem, size = 0x2000, scoped, tag = 'input window, operand 1']
    #allocation10 [shape = 's32[2]{0}', space=sflag, size = 0x8, scoped, tag = 'scoped memory for tpu_custom_call.1']
    #allocation11 [shape = 'u8[8192]{0}', space=vmem, size = 0x2000, scoped, tag = 'output window, operand 0']
    #allocation12 [shape = 'u8[8192]{0}', space=vmem, size = 0x2000, scoped, tag = 'output window, operand 1']
    #allocation13 [shape = 's32[2]{0}', space=sflag, size = 0x8, scoped, tag = 'scoped memory for tpu_custom_call.1']
    %10 = vsyncpa [#allocation7], 0
    %s11 = scalar_lea.sflag [#allocation7], 1
    %12 = vsyncpa %s11, 0
    %13 = vsyncpa [#allocation10], 0
    %s14 = scalar_lea.sflag [#allocation10], 1
    %15 = vsyncpa %s14, 0
    %16 = vsyncpa [#allocation8], 0
    %s17 = scalar_lea.sflag [#allocation8], 1
    %18 = vsyncpa %s17, 0
    %19 = vsyncpa [#allocation13], 0
    %s20 = scalar_lea.sflag [#allocation13], 1
    %21 = vsyncpa %s20, 0
    loop: start=0, step=1, limit=4
    $region2: #{tpu_custom_call.1} parent=1 // loop_pre_header
      _
    $region3: #{tpu_custom_call.1} parent=1 // loop_header
      %s23 = sphi 0, %s27
      %p24 = scmp.ge.s32.totalorder %s23, 4
      %s30 = sphi 0, %s42
      %s31 = sphi 0, %s38
      %s32 = sphi 0, %s30
      %s33 = sphi 0, %s31
      %s34 = sphi 0, %s32
      %s35 = sphi 0, %s33
      %s47 = sphi 0, %s49
      %s50 = sphi 0, %s47
      %s51 = sphi 0, %s50
      %s67 = sphi 0, %s51
      %s77 = sphi 0, %s79
      %s80 = sphi 0, %s77
      %s81 = sphi 0, %s80
      %s97 = sphi 0, %s81
      %s105 = sphi 0, %s107
      %s108 = sphi 0, %s105
      %s109 = sphi 0, %s108
      %s125 = sphi 0, %s109
      %s135 = sphi 0, %s137
      %s138 = sphi 0, %s135
      %s139 = sphi 0, %s138
      %s155 = sphi 0, %s139
    $region4: #{tpu_custom_call.1} parent=1 // loop_header_branch
      %26 = sbr.rel (%p24) target = $region8
    $region5: #{tpu_custom_call.1} parent=1 // loop_body
      %s28 = ssub.s32 %s23, 1
      %s29 = ssub.s32 %s23, 2
      %s36 = sadd.s32 1, %s31
      %p37 = scmp.ge.s32.totalorder %s36, 2
      %s38 = scalar_select %p37, 0, %s36
      %s39 = sadd.s32 1, %s30
      %s40 = scalar_select %p37, %s39, %s30
      %p41 = scmp.ge.s32.totalorder %s40, 1
      %s42 = scalar_select %p41, 0, %s40
      %s43 = ssub.s32 %s31, %s38
      %s44 = ssub.s32 %s30, %s42
      %s45 = sor.u32 %s43, %s44
      %p46 = scmp.eq.s32.totalorder %s45, 0
      %s48 = sadd.s32 %s47, 1
      %s49 = scalar_select %p46, %s47, %s48
      %p52 = pneg %p46
      %p53 = scmp.eq.s32.totalorder %s23, 1
      %p54 = por %p52, %p53
      %p55 = scmp.ne.s32.totalorder %s47, %s50
      %p56 = scmp.eq.s32.totalorder %s23, 0
      %p57 = por %p55, %p56
      %p58 = scmp.ne.s32.totalorder %s47, %s50
      %p59 = scmp.eq.s32.totalorder %s28, 1
      %p60 = por %p58, %p59
      %p61 = scmp.ne.s32.totalorder %s50, %s51
      %p62 = scmp.eq.s32.totalorder %s28, 0
      %p63 = por %p61, %p62
      %p64 = scmp.ne.s32.totalorder %s50, %s51
      %p65 = scmp.eq.s32.totalorder %s29, 1
      %p66 = por %p64, %p65
      %p68 = scmp.ne.s32.totalorder %s51, %s67
      %p69 = scmp.eq.s32.totalorder %s29, 0
      %p70 = por %p68, %p69
      %s71 = ssub.s32 1, %s31
      %s72 = ssub.s32 1, %s38
      %s73 = ssub.s32 %s71, %s72
      %s74 = ssub.s32 %s30, %s42
      %s75 = sor.u32 %s73, %s74
      %p76 = scmp.eq.s32.totalorder %s75, 0
      %s78 = sadd.s32 %s77, 1
      %s79 = scalar_select %p76, %s77, %s78
      %p82 = pneg %p76
      %p83 = scmp.eq.s32.totalorder %s23, 1
      %p84 = por %p82, %p83
      %p85 = scmp.ne.s32.totalorder %s77, %s80
      %p86 = scmp.eq.s32.totalorder %s23, 0
      %p87 = por %p85, %p86
      %p88 = scmp.ne.s32.totalorder %s77, %s80
      %p89 = scmp.eq.s32.totalorder %s28, 1
      %p90 = por %p88, %p89
      %p91 = scmp.ne.s32.totalorder %s80, %s81
      %p92 = scmp.eq.s32.totalorder %s28, 0
      %p93 = por %p91, %p92
      %p94 = scmp.ne.s32.totalorder %s80, %s81
      %p95 = scmp.eq.s32.totalorder %s29, 1
      %p96 = por %p94, %p95
      %p98 = scmp.ne.s32.totalorder %s81, %s97
      %p99 = scmp.eq.s32.totalorder %s29, 0
      %p100 = por %p98, %p99
      %s101 = ssub.s32 %s31, %s38
      %s102 = ssub.s32 %s30, %s42
      %s103 = sor.u32 %s101, %s102
      %p104 = scmp.eq.s32.totalorder %s103, 0
      %s106 = sadd.s32 %s105, 1
      %s107 = scalar_select %p104, %s105, %s106
      %p110 = pneg %p104
      %p111 = scmp.eq.s32.totalorder %s23, 1
      %p112 = por %p110, %p111
      %p113 = scmp.ne.s32.totalorder %s105, %s108
      %p114 = scmp.eq.s32.totalorder %s23, 0
      %p115 = por %p113, %p114
      %p116 = scmp.ne.s32.totalorder %s105, %s108
      %p117 = scmp.eq.s32.totalorder %s28, 1
      %p118 = por %p116, %p117
      %p119 = scmp.ne.s32.totalorder %s108, %s109
      %p120 = scmp.eq.s32.totalorder %s28, 0
      %p121 = por %p119, %p120
      %p122 = scmp.ne.s32.totalorder %s108, %s109
      %p123 = scmp.eq.s32.totalorder %s29, 1
      %p124 = por %p122, %p123
      %p126 = scmp.ne.s32.totalorder %s109, %s125
      %p127 = scmp.eq.s32.totalorder %s29, 0
      %p128 = por %p126, %p127
      %s129 = ssub.s32 1, %s31
      %s130 = ssub.s32 1, %s38
      %s131 = ssub.s32 %s129, %s130
      %s132 = ssub.s32 %s30, %s42
      %s133 = sor.u32 %s131, %s132
      %p134 = scmp.eq.s32.totalorder %s133, 0
      %s136 = sadd.s32 %s135, 1
      %s137 = scalar_select %p134, %s135, %s136
      %p140 = pneg %p134
      %p141 = scmp.eq.s32.totalorder %s23, 1
      %p142 = por %p140, %p141
      %p143 = scmp.ne.s32.totalorder %s135, %s138
      %p144 = scmp.eq.s32.totalorder %s23, 0
      %p145 = por %p143, %p144
      %p146 = scmp.ne.s32.totalorder %s135, %s138
      %p147 = scmp.eq.s32.totalorder %s28, 1
      %p148 = por %p146, %p147
      %p149 = scmp.ne.s32.totalorder %s138, %s139
      %p150 = scmp.eq.s32.totalorder %s28, 0
      %p151 = por %p149, %p150
      %p152 = scmp.ne.s32.totalorder %s138, %s139
      %p153 = scmp.eq.s32.totalorder %s29, 1
      %p154 = por %p152, %p153
      %p156 = scmp.ne.s32.totalorder %s139, %s155
      %p157 = scmp.eq.s32.totalorder %s29, 0
      %p158 = por %p156, %p157
      %p159 = scmp.le.s32.totalorder 1, %s23
      %p160 = scmp.lt.s32.totalorder %s23, 3
      %p161 = pnand %p159, %p160
      %p162 = pneg %p161
      // Predicated region
      $region9: #{tpu_custom_call.1} parent=5 // pred_check
        _
      $region10: #{tpu_custom_call.1} parent=5 // pred_check_branch
        %164 = sbr.rel (%p161) target = $region12
      $region11: #{tpu_custom_call.1} parent=5 // pred_region
        %s165 = ssub.s32 %s23, 1
      $region12: #{tpu_custom_call.1} parent=5 // pred_fallthru
        _
      %p166 = scmp.lt.s32.totalorder %s23, 2
      // Predicated region
      $region13: #{tpu_custom_call.1} parent=5 // pred_check
        %p167 = pneg %p166
      $region14: #{tpu_custom_call.1} parent=5 // pred_check_branch
        %169 = sbr.rel (%p167) target = $region16
      $region15: #{tpu_custom_call.1} parent=5 // pred_region
        // Predicated region
        $region17: #{tpu_custom_call.1} parent=15 // pred_check
          %p170 = pneg %p57
        $region18: #{tpu_custom_call.1} parent=15 // pred_check_branch
          %172 = sbr.rel (%p170) target = $region20
        $region19: #{tpu_custom_call.1} parent=15 // pred_region
          %s173 = sand.u32 %s47, 1
          %s174 = scalar_lea.sflag [#allocation7], %s173
          %s175 = sand.u32 %s47, 1
          %s176 = smul.addr %s175, 8
          %s177 = scalar_lea.vmem [#allocation6], %s176
          %s178 = smul.u32 4, %s31
          %s180 = ssub.s32 128, 128
          %181 = vsyncadd %s174, %s180
          %s182 = smul.addr %s30, 2
          %s183 = smul.addr %s178, 2
          %s184 = sadd.s32 %s182, %s183
          %s185 = smul.addr %s184, 32
          %s186 = scalar_lea.hbm %s0, %s185
          %s187 = sshll.u32 %s177, 4
          %s188 = int_to_ptr.vmem [resolvable:$true] %s187
          %193 = dma.hbm_to_vmem [thread:$0]  %s186, 128, %s188, %s174, 64, 32, 2
        $region20: #{tpu_custom_call.1} parent=15 // pred_fallthru
          _
        // Predicated region
        $region21: #{tpu_custom_call.1} parent=15 // pred_check
          %p194 = pneg %p87
        $region22: #{tpu_custom_call.1} parent=15 // pred_check_branch
          %196 = sbr.rel (%p194) target = $region24
        $region23: #{tpu_custom_call.1} parent=15 // pred_region
          %s197 = sand.u32 %s77, 1
          %s198 = scalar_lea.sflag [#allocation10], %s197
          %s199 = sand.u32 %s77, 1
          %s200 = smul.addr %s199, 8
          %s201 = scalar_lea.vmem [#allocation9], %s200
          %s202 = ssub.s32 1, %s31
          %s203 = smul.u32 4, %s202
          %s205 = ssub.s32 128, 128
          %206 = vsyncadd %s198, %s205
          %s207 = smul.addr %s30, 2
          %s208 = sadd.s32 1, %s207
          %s209 = smul.addr %s203, 2
          %s210 = sadd.s32 %s208, %s209
          %s211 = smul.addr %s210, 32
          %s212 = scalar_lea.hbm %s1, %s211
          %s213 = sshll.u32 %s201, 4
          %s214 = int_to_ptr.vmem [resolvable:$true] %s213
          %219 = dma.hbm_to_vmem [thread:$0]  %s212, 128, %s214, %s198, 64, 32, 2
        $region24: #{tpu_custom_call.1} parent=15 // pred_fallthru
          _
      $region16: #{tpu_custom_call.1} parent=5 // pred_fallthru
        _
      %p220 = scmp.le.s32.totalorder 1, %s23
      %p221 = scmp.lt.s32.totalorder %s23, 3
      %p222 = pnand %p220, %p221
      %p223 = pneg %p222
      // Predicated region
      $region25: #{tpu_custom_call.1} parent=5 // pred_check
        _
      $region26: #{tpu_custom_call.1} parent=5 // pred_check_branch
        %225 = sbr.rel (%p222) target = $region28
      $region27: #{tpu_custom_call.1} parent=5 // pred_region
        %s226 = ssub.s32 %s23, 1
        %s227 = sand.u32 %s50, 1
        %s228 = scalar_lea.sflag [#allocation7], %s227
        %s229 = sand.u32 %s50, 1
        %s230 = smul.addr %s229, 8
        %s231 = scalar_lea.vmem [#allocation6], %s230
        // Predicated region
        $region29: #{tpu_custom_call.1} parent=27 // pred_check
          %p232 = pneg %p63
        $region30: #{tpu_custom_call.1} parent=27 // pred_check_branch
          %234 = sbr.rel (%p232) target = $region32
        $region31: #{tpu_custom_call.1} parent=27 // pred_region
          %235 = dma.done %s228, 128
        $region32: #{tpu_custom_call.1} parent=27 // pred_fallthru
          _
        %s236 = sand.u32 %s80, 1
        %s237 = scalar_lea.sflag [#allocation10], %s236
        %s238 = sand.u32 %s80, 1
        %s239 = smul.addr %s238, 8
        %s240 = scalar_lea.vmem [#allocation9], %s239
        // Predicated region
        $region33: #{tpu_custom_call.1} parent=27 // pred_check
          %p241 = pneg %p93
        $region34: #{tpu_custom_call.1} parent=27 // pred_check_branch
          %243 = sbr.rel (%p241) target = $region36
        $region35: #{tpu_custom_call.1} parent=27 // pred_region
          %244 = dma.done %s237, 128
        $region36: #{tpu_custom_call.1} parent=27 // pred_fallthru
          _
        %s245 = sand.u32 %s50, 1
        %s246 = scalar_lea.sflag [#allocation7], %s245
        %s247 = sand.u32 %s50, 1
        %s248 = smul.addr %s247, 8
        %s249 = scalar_lea.vmem [#allocation6], %s248
        %p250 = pneg %p63
        %p251 = pneg %p60
        %s252 = sand.u32 %s80, 1
        %s253 = scalar_lea.sflag [#allocation10], %s252
        %s254 = sand.u32 %s80, 1
        %s255 = smul.addr %s254, 8
        %s256 = scalar_lea.vmem [#allocation9], %s255
        %p257 = pneg %p93
        %p258 = pneg %p90
        %p259 = pneg %p121
        %p260 = pneg %p118
        %s261 = sand.u32 %s108, 1
        %s262 = scalar_lea.sflag [#allocation8], %s261
        %s263 = sand.u32 %s108, 1
        %s264 = smul.addr %s263, 8
        %s265 = scalar_lea.vmem [#allocation11], %s264
        %p266 = pneg %p151
        %p267 = pneg %p148
        %s268 = sand.u32 %s138, 1
        %s269 = scalar_lea.sflag [#allocation13], %s268
        %s270 = sand.u32 %s138, 1
        %s271 = smul.addr %s270, 8
        %s272 = scalar_lea.vmem [#allocation12], %s271
        %s273 = smul.u32 4, %s33
        %s274 = ssub.s32 1, %s33
        %s275 = smul.u32 4, %s274
        %s276 = smul.u32 4, %s33
        %s277 = ssub.s32 1, %s33
        %s278 = smul.u32 4, %s277
        %p279 = scmp.eq.s32.totalorder %s33, 0
        // Predicated region
        $region37: #{tpu_custom_call.1} parent=27 // pred_check
          %p280 = pneg %p279
        $region38: #{tpu_custom_call.1} parent=27 // pred_check_branch
          %282 = sbr.rel (%p280) target = $region40
        $region39: #{tpu_custom_call.1} parent=27 // pred_region
          // Predicated region
          $region41: #{tpu_custom_call.1} parent=39 // pred_check
            _
          $region42: #{tpu_custom_call.1} parent=39 // pred_check_branch
            %284 = sbr.rel target = $region44
          $region43: #{tpu_custom_call.1} parent=39 // pred_region
            %285 = sst [smem:[#allocation16]] [#allocation15]
            %286 = sst [smem:[#allocation17]] [#allocation14]
          $region44: #{tpu_custom_call.1} parent=39 // pred_fallthru
            _
          %288 = shalt.err (0)
          %s290 = sshll.u32 [#allocation2], 4
          %s291 = int_to_ptr.vmem [resolvable:$true] %s290
          %293 = dma.hbm_to_vmem [thread:$0]  %s2, 1024, %s291, [#allocation5]
          %vm294 = vcmask 254976
          %295 = vst.msk [vmem:[#allocation3] sm:$0x3] %vm294, 0.0
          %296 = vst.msk [vmem:[#allocation3 + $0x2] sm:$0x3] %vm294, 0.0
          %297 = vst.msk [vmem:[#allocation4] sm:$0x3] %vm294, 0.0
          %298 = vst.msk [vmem:[#allocation4 + $0x2] sm:$0x3] %vm294, 0.0
          %s299 = smul.u32 2, 32
          %s300 = smul.u32 %s299, 1
          %s301 = sshll.u32 %s300, 4
          %302 = dma.done [#allocation5], %s301
        $region40: #{tpu_custom_call.1} parent=27 // pred_fallthru
          _
        %v303 = vld [vmem:[#allocation2] sm:$0xff]
        %v304 = vld [vmem:[#allocation2 + $0x8] sm:$0xff]
        %v305 = vld [vmem:[#allocation2 + $0x10] sm:$0xff]
        %v306 = vld [vmem:[#allocation2 + $0x18] sm:$0xff]
        %s307 = scalar_lea.vmem [#allocation2], 32
        %v308 = vld [vmem:[%s307] sm:$0xff]
        %v309 = vld [vmem:[%s307 + $0x8] sm:$0xff]
        %v310 = vld [vmem:[%s307 + $0x10] sm:$0xff]
        %v311 = vld [vmem:[%s307 + $0x18] sm:$0xff]
        %v312 = vld [vmem:[%s231] sm:$0x3]
        %v313 = vld [vmem:[#allocation3] sm:$0x3]
        %vm314 = vcmask 261120
        %v316 = vsel %vm314, %v313, 0
        %318 = vmatprep.subr.mxu0 0.0
        %319 = vmatpush1.msra.mxu0 %v303
        %320 = vmatprep.subr.mxu0 0.0
        %321 = vmatpush1.msra.mxu0 %v304
        %322 = vmatprep.subr.mxu0 0.0
        %323 = vmatpush1.msra.mxu0 %v305
        %324 = vmatprep.subr.mxu0 0.0
        %325 = vmatpush1.msra.mxu0 %v306
        %326 = vmatprep.subr.mxu0 0.0
        %327 = vmatpush1.msra.mxu0 0.0
        %328 = vmatprep.subr.mxu0 0.0
        %329 = vmatpush1.msra.mxu0 0.0
        %330 = vmatprep.subr.mxu0 0.0
        %331 = vmatpush1.msra.mxu0 0.0
        %332 = vmatprep.subr.mxu0 0.0
        %333 = vmatpush1.msra.mxu0 0.0
        %334 = vmatprep.subr.mxu0 0.0
        %335 = vmatpush1.msra.mxu0 0.0
        %336 = vmatprep.subr.mxu0 0.0
        %337 = vmatpush1.msra.mxu0 0.0
        %338 = vmatprep.subr.mxu0 0.0
        %339 = vmatpush1.msra.mxu0 0.0
        %340 = vmatprep.subr.mxu0 0.0
        %341 = vmatpush1.msra.mxu0 0.0
        %342 = vmatprep.subr.mxu0 0.0
        %343 = vmatpush1.msra.mxu0 0.0
        %344 = vmatprep.subr.mxu0 0.0
        %345 = vmatpush1.msra.mxu0 0.0
        %346 = vmatprep.subr.mxu0 0.0
        %347 = vmatpush1.msra.mxu0 0.0
        %348 = vmatprep.subr.mxu0 0.0
        %349 = vmatpush1.msra.mxu0 0.0
        %350 = vmatprep.subr.mxu0 0.0
        %351 = vmatpush1.msra.mxu0 0.0
        %352 = vmatprep.subr.mxu0 0.0
        %353 = vmatpush1.msra.mxu0 0.0
        %354 = vmatprep.subr.mxu0 0.0
        %355 = vmatpush1.msra.mxu0 0.0
        %356 = vmatprep.subr.mxu0 0.0
        %357 = vmatpush1.msra.mxu0 0.0
        %358 = vmatprep.subr.mxu0 0.0
        %359 = vmatpush1.msra.mxu0 0.0
        %360 = vmatprep.subr.mxu0 0.0
        %361 = vmatpush1.msra.mxu0 0.0
        %362 = vmatprep.subr.mxu0 0.0
        %363 = vmatpush1.msra.mxu0 0.0
        %364 = vmatprep.subr.mxu0 0.0
        %365 = vmatpush1.msra.mxu0 0.0
        %366 = vmatprep.subr.mxu0 0.0
        %367 = vmatpush1.msra.mxu0 0.0
        %368 = vmatprep.subr.mxu0 0.0
        %369 = vmatpush1.msra.mxu0 0.0
        %370 = vmatprep.subr.mxu0 0.0
        %371 = vmatpush1.msra.mxu0 0.0
        %372 = vmatprep.subr.mxu0 0.0
        %373 = vmatpush1.msra.mxu0 0.0
        %374 = vmatprep.subr.mxu0 0.0
        %375 = vmatpush1.msra.mxu0 0.0
        %376 = vmatprep.subr.mxu0 0.0
        %377 = vmatpush1.msra.mxu0 0.0
        %378 = vmatprep.subr.mxu0 0.0
        %379 = vmatpush1.msra.mxu0 0.0
        %380 = vmatprep.subr.mxu0 0.0
        %381 = vmatpush1.msra.mxu0 0.0
        %382 = vmatprep.mubr.f32.mxu0 0.0
        %383 = vmatmul.mubr.f32.gmra.mrb[0].mxu0 %v316
        %v384 = vpop.f32.mrb[0].mxu0
        %v385 = vadd.f32 0.0, %v384
        %v386 = vpop.f32.mrb[0].mxu0
        %387 = vdwg.mxu0
        %v388 = vadd.f32 %v312, %v385
        %s389 = scalar_lea.vmem %s240, 6 [#allocation9]
        %v390 = vld [vmem:[%s389] sm:$0x3]
        %s391 = scalar_lea.vmem [#allocation3], 2
        %v392 = vld [vmem:[%s391] sm:$0x3]
        %v394 = vsel %vm314, %v392, 0
        %396 = vmatprep.subr.mxu0 0.0
        %397 = vmatpush1.msra.mxu0 %v308
        %398 = vmatprep.subr.mxu0 0.0
        %399 = vmatpush1.msra.mxu0 %v309
        %400 = vmatprep.subr.mxu0 0.0
        %401 = vmatpush1.msra.mxu0 %v310
        %402 = vmatprep.subr.mxu0 0.0
        %403 = vmatpush1.msra.mxu0 %v311
        %404 = vmatprep.subr.mxu0 0.0
        %405 = vmatpush1.msra.mxu0 0.0
        %406 = vmatprep.subr.mxu0 0.0
        %407 = vmatpush1.msra.mxu0 0.0
        %408 = vmatprep.subr.mxu0 0.0
        %409 = vmatpush1.msra.mxu0 0.0
        %410 = vmatprep.subr.mxu0 0.0
        %411 = vmatpush1.msra.mxu0 0.0
        %412 = vmatprep.subr.mxu0 0.0
        %413 = vmatpush1.msra.mxu0 0.0
        %414 = vmatprep.subr.mxu0 0.0
        %415 = vmatpush1.msra.mxu0 0.0
        %416 = vmatprep.subr.mxu0 0.0
        %417 = vmatpush1.msra.mxu0 0.0
        %418 = vmatprep.subr.mxu0 0.0
        %419 = vmatpush1.msra.mxu0 0.0
        %420 = vmatprep.subr.mxu0 0.0
        %421 = vmatpush1.msra.mxu0 0.0
        %422 = vmatprep.subr.mxu0 0.0
        %423 = vmatpush1.msra.mxu0 0.0
        %424 = vmatprep.subr.mxu0 0.0
        %425 = vmatpush1.msra.mxu0 0.0
        %426 = vmatprep.subr.mxu0 0.0
        %427 = vmatpush1.msra.mxu0 0.0
        %428 = vmatprep.subr.mxu0 0.0
        %429 = vmatpush1.msra.mxu0 0.0
        %430 = vmatprep.subr.mxu0 0.0
        %431 = vmatpush1.msra.mxu0 0.0
        %432 = vmatprep.subr.mxu0 0.0
        %433 = vmatpush1.msra.mxu0 0.0
        %434 = vmatprep.subr.mxu0 0.0
        %435 = vmatpush1.msra.mxu0 0.0
        %436 = vmatprep.subr.mxu0 0.0
        %437 = vmatpush1.msra.mxu0 0.0
        %438 = vmatprep.subr.mxu0 0.0
        %439 = vmatpush1.msra.mxu0 0.0
        %440 = vmatprep.subr.mxu0 0.0
        %441 = vmatpush1.msra.mxu0 0.0
        %442 = vmatprep.subr.mxu0 0.0
        %443 = vmatpush1.msra.mxu0 0.0
        %444 = vmatprep.subr.mxu0 0.0
        %445 = vmatpush1.msra.mxu0 0.0
        %446 = vmatprep.subr.mxu0 0.0
        %447 = vmatpush1.msra.mxu0 0.0
        %448 = vmatprep.subr.mxu0 0.0
        %449 = vmatpush1.msra.mxu0 0.0
        %450 = vmatprep.subr.mxu0 0.0
        %451 = vmatpush1.msra.mxu0 0.0
        %452 = vmatprep.subr.mxu0 0.0
        %453 = vmatpush1.msra.mxu0 0.0
        %454 = vmatprep.subr.mxu0 0.0
        %455 = vmatpush1.msra.mxu0 0.0
        %456 = vmatprep.subr.mxu0 0.0
        %457 = vmatpush1.msra.mxu0 0.0
        %458 = vmatprep.subr.mxu0 0.0
        %459 = vmatpush1.msra.mxu0 0.0
        %460 = vmatprep.mubr.f32.mxu0 0.0
        %461 = vmatmul.mubr.f32.gmra.mrb[0].mxu0 %v394
        %v462 = vpop.f32.mrb[0].mxu0
        %v463 = vadd.f32 0.0, %v462
        %v464 = vpop.f32.mrb[0].mxu0
        %465 = vdwg.mxu0
        %v466 = vadd.f32 %v390, %v463
        %v467 = vld [vmem:[#allocation4] sm:$0x3]
        %v468 = vmul.f32 %v388, 0.5
        %v469 = vtanh.pop %v468
        %v470 = vmul.f32 %v469, 0.5
        %v471 = vadd.f32 %v470, 0.5
        %v472 = vtanh.pop %v388
        %474 = vrot.lane.b32.xlu0 %v467, 32
        %v475 = vpop.permute.xlu0 %474
        %v477 = vmul.f32 %v471, %v475
        %479 = vrot.lane.b32.xlu0 %v472, 64
        %v480 = vpop.permute.xlu0 %479
        %v482 = vmul.f32 %v471, %v480
        %484 = vrot.lane.b32.xlu0 %v482, 32
        %v485 = vpop.permute.xlu0 %484
        %v487 = vadd.f32 %v477, %v485
        %v488 = vtanh.pop %v487
        %490 = vrot.lane.b32.xlu0 %v488, 64
        %v491 = vpop.permute.xlu0 %490
        %v493 = vmul.f32 %v471, %v491
        %s494 = scalar_lea.vmem [#allocation4], 2
        %v495 = vld [vmem:[%s494] sm:$0x3]
        %v496 = vmul.f32 %v466, 0.5
        %v497 = vtanh.pop %v496
        %v498 = vmul.f32 %v497, 0.5
        %v499 = vadd.f32 %v498, 0.5
        %v500 = vtanh.pop %v466
        %502 = vrot.lane.b32.xlu0 %v495, 32
        %v503 = vpop.permute.xlu0 %502
        %v505 = vmul.f32 %v499, %v503
        %507 = vrot.lane.b32.xlu0 %v500, 64
        %v508 = vpop.permute.xlu0 %507
        %v510 = vmul.f32 %v499, %v508
        %512 = vrot.lane.b32.xlu0 %v510, 32
        %v513 = vpop.permute.xlu0 %512
        %v515 = vadd.f32 %v505, %v513
        %v516 = vtanh.pop %v515
        %518 = vrot.lane.b32.xlu0 %v516, 64
        %v519 = vpop.permute.xlu0 %518
        %v521 = vmul.f32 %v499, %v519
        %523 = vrot.lane.b32.xlu0 %v487, 96
        %v524 = vpop.permute.xlu0 %523
        %vm526 = vcmask 254976
        %527 = vst.msk [vmem:[#allocation4] sm:$0x3] %vm526, %v524
        %529 = vrot.lane.b32.xlu0 %v515, 96
        %v530 = vpop.permute.xlu0 %529
        %532 = vst.msk [vmem:[%s494] sm:$0x3] %vm526, %v530
        %534 = vrot.lane.b32.xlu0 %v493, 32
        %v535 = vpop.permute.xlu0 %534
        %537 = vst.msk [vmem:[#allocation3] sm:$0x3] %vm526, %v535
        %539 = vrot.lane.b32.xlu0 %v521, 32
        %v540 = vpop.permute.xlu0 %539
        %542 = vst.msk [vmem:[%s391] sm:$0x3] %vm526, %v540
        %543 = vst.msk [vmem:[%s265] sm:$0x3] %vm526, %v535
        %s544 = scalar_lea.vmem %s272, 6 [#allocation12]
        %545 = vst.msk [vmem:[%s544] sm:$0x3] %vm526, %v540
        %s546 = scalar_lea.vmem %s231, 2 [#allocation6]
        %v547 = vld [vmem:[%s546] sm:$0x3]
        %v548 = vld [vmem:[#allocation3] sm:$0x3]
        %v550 = vsel %vm314, %v548, 0
        %552 = vmatprep.subr.mxu0 0.0
        %553 = vmatpush1.msra.mxu0 %v303
        %554 = vmatprep.subr.mxu0 0.0
        %555 = vmatpush1.msra.mxu0 %v304
        %556 = vmatprep.subr.mxu0 0.0
        %557 = vmatpush1.msra.mxu0 %v305
        %558 = vmatprep.subr.mxu0 0.0
        %559 = vmatpush1.msra.mxu0 %v306
        %560 = vmatprep.subr.mxu0 0.0
        %561 = vmatpush1.msra.mxu0 0.0
        %562 = vmatprep.subr.mxu0 0.0
        %563 = vmatpush1.msra.mxu0 0.0
        %564 = vmatprep.subr.mxu0 0.0
        %565 = vmatpush1.msra.mxu0 0.0
        %566 = vmatprep.subr.mxu0 0.0
        %567 = vmatpush1.msra.mxu0 0.0
        %568 = vmatprep.subr.mxu0 0.0
        %569 = vmatpush1.msra.mxu0 0.0
        %570 = vmatprep.subr.mxu0 0.0
        %571 = vmatpush1.msra.mxu0 0.0
        %572 = vmatprep.subr.mxu0 0.0
        %573 = vmatpush1.msra.mxu0 0.0
        %574 = vmatprep.subr.mxu0 0.0
        %575 = vmatpush1.msra.mxu0 0.0
        %576 = vmatprep.subr.mxu0 0.0
        %577 = vmatpush1.msra.mxu0 0.0
        %578 = vmatprep.subr.mxu0 0.0
        %579 = vmatpush1.msra.mxu0 0.0
        %580 = vmatprep.subr.mxu0 0.0
        %581 = vmatpush1.msra.mxu0 0.0
        %582 = vmatprep.subr.mxu0 0.0
        %583 = vmatpush1.msra.mxu0 0.0
        %584 = vmatprep.subr.mxu0 0.0
        %585 = vmatpush1.msra.mxu0 0.0
        %586 = vmatprep.subr.mxu0 0.0
        %587 = vmatpush1.msra.mxu0 0.0
        %588 = vmatprep.subr.mxu0 0.0
        %589 = vmatpush1.msra.mxu0 0.0
        %590 = vmatprep.subr.mxu0 0.0
        %591 = vmatpush1.msra.mxu0 0.0
        %592 = vmatprep.subr.mxu0 0.0
        %593 = vmatpush1.msra.mxu0 0.0
        %594 = vmatprep.subr.mxu0 0.0
        %595 = vmatpush1.msra.mxu0 0.0
        %596 = vmatprep.subr.mxu0 0.0
        %597 = vmatpush1.msra.mxu0 0.0
        %598 = vmatprep.subr.mxu0 0.0
        %599 = vmatpush1.msra.mxu0 0.0
        %600 = vmatprep.subr.mxu0 0.0
        %601 = vmatpush1.msra.mxu0 0.0
        %602 = vmatprep.subr.mxu0 0.0
        %603 = vmatpush1.msra.mxu0 0.0
        %604 = vmatprep.subr.mxu0 0.0
        %605 = vmatpush1.msra.mxu0 0.0
        %606 = vmatprep.subr.mxu0 0.0
        %607 = vmatpush1.msra.mxu0 0.0
        %608 = vmatprep.subr.mxu0 0.0
        %609 = vmatpush1.msra.mxu0 0.0
        %610 = vmatprep.subr.mxu0 0.0
        %611 = vmatpush1.msra.mxu0 0.0
        %612 = vmatprep.subr.mxu0 0.0
        %613 = vmatpush1.msra.mxu0 0.0
        %614 = vmatprep.subr.mxu0 0.0
        %615 = vmatpush1.msra.mxu0 0.0
        %616 = vmatprep.mubr.f32.mxu0 0.0
        %617 = vmatmul.mubr.f32.gmra.mrb[0].mxu0 %v550
        %v618 = vpop.f32.mrb[0].mxu0
        %v619 = vadd.f32 0.0, %v618
        %v620 = vpop.f32.mrb[0].mxu0
        %621 = vdwg.mxu0
        %v622 = vadd.f32 %v547, %v619
        %s623 = scalar_lea.vmem %s240, 4 [#allocation9]
        %v624 = vld [vmem:[%s623] sm:$0x3]
        %v625 = vld [vmem:[%s391] sm:$0x3]
        %v627 = vsel %vm314, %v625, 0
        %629 = vmatprep.subr.mxu0 0.0
        %630 = vmatpush1.msra.mxu0 %v308
        %631 = vmatprep.subr.mxu0 0.0
        %632 = vmatpush1.msra.mxu0 %v309
        %633 = vmatprep.subr.mxu0 0.0
        %634 = vmatpush1.msra.mxu0 %v310
        %635 = vmatprep.subr.mxu0 0.0
        %636 = vmatpush1.msra.mxu0 %v311
        %637 = vmatprep.subr.mxu0 0.0
        %638 = vmatpush1.msra.mxu0 0.0
        %639 = vmatprep.subr.mxu0 0.0
        %640 = vmatpush1.msra.mxu0 0.0
        %641 = vmatprep.subr.mxu0 0.0
        %642 = vmatpush1.msra.mxu0 0.0
        %643 = vmatprep.subr.mxu0 0.0
        %644 = vmatpush1.msra.mxu0 0.0
        %645 = vmatprep.subr.mxu0 0.0
        %646 = vmatpush1.msra.mxu0 0.0
        %647 = vmatprep.subr.mxu0 0.0
        %648 = vmatpush1.msra.mxu0 0.0
        %649 = vmatprep.subr.mxu0 0.0
        %650 = vmatpush1.msra.mxu0 0.0
        %651 = vmatprep.subr.mxu0 0.0
        %652 = vmatpush1.msra.mxu0 0.0
        %653 = vmatprep.subr.mxu0 0.0
        %654 = vmatpush1.msra.mxu0 0.0
        %655 = vmatprep.subr.mxu0 0.0
        %656 = vmatpush1.msra.mxu0 0.0
        %657 = vmatprep.subr.mxu0 0.0
        %658 = vmatpush1.msra.mxu0 0.0
        %659 = vmatprep.subr.mxu0 0.0
        %660 = vmatpush1.msra.mxu0 0.0
        %661 = vmatprep.subr.mxu0 0.0
        %662 = vmatpush1.msra.mxu0 0.0
        %663 = vmatprep.subr.mxu0 0.0
        %664 = vmatpush1.msra.mxu0 0.0
        %665 = vmatprep.subr.mxu0 0.0
        %666 = vmatpush1.msra.mxu0 0.0
        %667 = vmatprep.subr.mxu0 0.0
        %668 = vmatpush1.msra.mxu0 0.0
        %669 = vmatprep.subr.mxu0 0.0
        %670 = vmatpush1.msra.mxu0 0.0
        %671 = vmatprep.subr.mxu0 0.0
        %672 = vmatpush1.msra.mxu0 0.0
        %673 = vmatprep.subr.mxu0 0.0
        %674 = vmatpush1.msra.mxu0 0.0
        %675 = vmatprep.subr.mxu0 0.0
        %676 = vmatpush1.msra.mxu0 0.0
        %677 = vmatprep.subr.mxu0 0.0
        %678 = vmatpush1.msra.mxu0 0.0
        %679 = vmatprep.subr.mxu0 0.0
        %680 = vmatpush1.msra.mxu0 0.0
        %681 = vmatprep.subr.mxu0 0.0
        %682 = vmatpush1.msra.mxu0 0.0
        %683 = vmatprep.subr.mxu0 0.0
        %684 = vmatpush1.msra.mxu0 0.0
        %685 = vmatprep.subr.mxu0 0.0
        %686 = vmatpush1.msra.mxu0 0.0
        %687 = vmatprep.subr.mxu0 0.0
        %688 = vmatpush1.msra.mxu0 0.0
        %689 = vmatprep.subr.mxu0 0.0
        %690 = vmatpush1.msra.mxu0 0.0
        %691 = vmatprep.subr.mxu0 0.0
        %692 = vmatpush1.msra.mxu0 0.0
        %693 = vmatprep.mubr.f32.mxu0 0.0
        %694 = vmatmul.mubr.f32.gmra.mrb[0].mxu0 %v627
        %v695 = vpop.f32.mrb[0].mxu0
        %v696 = vadd.f32 0.0, %v695
        %v697 = vpop.f32.mrb[0].mxu0
        %698 = vdwg.mxu0
        %v699 = vadd.f32 %v624, %v696
        %v700 = vld [vmem:[#allocation4] sm:$0x3]
        %v701 = vmul.f32 %v622, 0.5
        %v702 = vtanh.pop %v701
        %v703 = vmul.f32 %v702, 0.5
        %v704 = vadd.f32 %v703, 0.5
        %v705 = vtanh.pop %v622
        %707 = vrot.lane.b32.xlu0 %v700, 32
        %v708 = vpop.permute.xlu0 %707
        %v710 = vmul.f32 %v704, %v708
        %712 = vrot.lane.b32.xlu0 %v705, 64
        %v713 = vpop.permute.xlu0 %712
        %v715 = vmul.f32 %v704, %v713
        %717 = vrot.lane.b32.xlu0 %v715, 32
        %v718 = vpop.permute.xlu0 %717
        %v720 = vadd.f32 %v710, %v718
        %v721 = vtanh.pop %v720
        %723 = vrot.lane.b32.xlu0 %v721, 64
        %v724 = vpop.permute.xlu0 %723
        %v726 = vmul.f32 %v704, %v724
        %v727 = vld [vmem:[%s494] sm:$0x3]
        %v728 = vmul.f32 %v699, 0.5
        %v729 = vtanh.pop %v728
        %v730 = vmul.f32 %v729, 0.5
        %v731 = vadd.f32 %v730, 0.5
        %v732 = vtanh.pop %v699
        %734 = vrot.lane.b32.xlu0 %v727, 32
        %v735 = vpop.permute.xlu0 %734
        %v737 = vmul.f32 %v731, %v735
        %739 = vrot.lane.b32.xlu0 %v732, 64
        %v740 = vpop.permute.xlu0 %739
        %v742 = vmul.f32 %v731, %v740
        %744 = vrot.lane.b32.xlu0 %v742, 32
        %v745 = vpop.permute.xlu0 %744
        %v747 = vadd.f32 %v737, %v745
        %v748 = vtanh.pop %v747
        %750 = vrot.lane.b32.xlu0 %v748, 64
        %v751 = vpop.permute.xlu0 %750
        %v753 = vmul.f32 %v731, %v751
        %755 = vrot.lane.b32.xlu0 %v720, 96
        %v756 = vpop.permute.xlu0 %755
        %758 = vst.msk [vmem:[#allocation4] sm:$0x3] %vm526, %v756
        %760 = vrot.lane.b32.xlu0 %v747, 96
        %v761 = vpop.permute.xlu0 %760
        %763 = vst.msk [vmem:[%s494] sm:$0x3] %vm526, %v761
        %765 = vrot.lane.b32.xlu0 %v726, 32
        %v766 = vpop.permute.xlu0 %765
        %768 = vst.msk [vmem:[#allocation3] sm:$0x3] %vm526, %v766
        %770 = vrot.lane.b32.xlu0 %v753, 32
        %v771 = vpop.permute.xlu0 %770
        %773 = vst.msk [vmem:[%s391] sm:$0x3] %vm526, %v771
        %s774 = scalar_lea.vmem %s265, 2 [#allocation11]
        %775 = vst.msk [vmem:[%s774] sm:$0x3] %vm526, %v766
        %s776 = scalar_lea.vmem %s272, 4 [#allocation12]
        %777 = vst.msk [vmem:[%s776] sm:$0x3] %vm526, %v771
        %s778 = scalar_lea.vmem %s231, 4 [#allocation6]
        %v779 = vld [vmem:[%s778] sm:$0x3]
        %v780 = vld [vmem:[#allocation3] sm:$0x3]
        %v782 = vsel %vm314, %v780, 0
        %784 = vmatprep.subr.mxu0 0.0
        %785 = vmatpush1.msra.mxu0 %v303
        %786 = vmatprep.subr.mxu0 0.0
        %787 = vmatpush1.msra.mxu0 %v304
        %788 = vmatprep.subr.mxu0 0.0
        %789 = vmatpush1.msra.mxu0 %v305
        %790 = vmatprep.subr.mxu0 0.0
        %791 = vmatpush1.msra.mxu0 %v306
        %792 = vmatprep.subr.mxu0 0.0
        %793 = vmatpush1.msra.mxu0 0.0
        %794 = vmatprep.subr.mxu0 0.0
        %795 = vmatpush1.msra.mxu0 0.0
        %796 = vmatprep.subr.mxu0 0.0
        %797 = vmatpush1.msra.mxu0 0.0
        %798 = vmatprep.subr.mxu0 0.0
        %799 = vmatpush1.msra.mxu0 0.0
        %800 = vmatprep.subr.mxu0 0.0
        %801 = vmatpush1.msra.mxu0 0.0
        %802 = vmatprep.subr.mxu0 0.0
        %803 = vmatpush1.msra.mxu0 0.0
        %804 = vmatprep.subr.mxu0 0.0
        %805 = vmatpush1.msra.mxu0 0.0
        %806 = vmatprep.subr.mxu0 0.0
        %807 = vmatpush1.msra.mxu0 0.0
        %808 = vmatprep.subr.mxu0 0.0
        %809 = vmatpush1.msra.mxu0 0.0
        %810 = vmatprep.subr.mxu0 0.0
        %811 = vmatpush1.msra.mxu0 0.0
        %812 = vmatprep.subr.mxu0 0.0
        %813 = vmatpush1.msra.mxu0 0.0
        %814 = vmatprep.subr.mxu0 0.0
        %815 = vmatpush1.msra.mxu0 0.0
        %816 = vmatprep.subr.mxu0 0.0
        %817 = vmatpush1.msra.mxu0 0.0
        %818 = vmatprep.subr.mxu0 0.0
        %819 = vmatpush1.msra.mxu0 0.0
        %820 = vmatprep.subr.mxu0 0.0
        %821 = vmatpush1.msra.mxu0 0.0
        %822 = vmatprep.subr.mxu0 0.0
        %823 = vmatpush1.msra.mxu0 0.0
        %824 = vmatprep.subr.mxu0 0.0
        %825 = vmatpush1.msra.mxu0 0.0
        %826 = vmatprep.subr.mxu0 0.0
        %827 = vmatpush1.msra.mxu0 0.0
        %828 = vmatprep.subr.mxu0 0.0
        %829 = vmatpush1.msra.mxu0 0.0
        %830 = vmatprep.subr.mxu0 0.0
        %831 = vmatpush1.msra.mxu0 0.0
        %832 = vmatprep.subr.mxu0 0.0
        %833 = vmatpush1.msra.mxu0 0.0
        %834 = vmatprep.subr.mxu0 0.0
        %835 = vmatpush1.msra.mxu0 0.0
        %836 = vmatprep.subr.mxu0 0.0
        %837 = vmatpush1.msra.mxu0 0.0
        %838 = vmatprep.subr.mxu0 0.0
        %839 = vmatpush1.msra.mxu0 0.0
        %840 = vmatprep.subr.mxu0 0.0
        %841 = vmatpush1.msra.mxu0 0.0
        %842 = vmatprep.subr.mxu0 0.0
        %843 = vmatpush1.msra.mxu0 0.0
        %844 = vmatprep.subr.mxu0 0.0
        %845 = vmatpush1.msra.mxu0 0.0
        %846 = vmatprep.subr.mxu0 0.0
        %847 = vmatpush1.msra.mxu0 0.0
        %848 = vmatprep.mubr.f32.mxu0 0.0
        %849 = vmatmul.mubr.f32.gmra.mrb[0].mxu0 %v782
        %v850 = vpop.f32.mrb[0].mxu0
        %v851 = vadd.f32 0.0, %v850
        %v852 = vpop.f32.mrb[0].mxu0
        %853 = vdwg.mxu0
        %v854 = vadd.f32 %v779, %v851
        %s855 = scalar_lea.vmem %s240, 2 [#allocation9]
        %v856 = vld [vmem:[%s855] sm:$0x3]
        %v857 = vld [vmem:[%s391] sm:$0x3]
        %v859 = vsel %vm314, %v857, 0
        %861 = vmatprep.subr.mxu0 0.0
        %862 = vmatpush1.msra.mxu0 %v308
        %863 = vmatprep.subr.mxu0 0.0
        %864 = vmatpush1.msra.mxu0 %v309
        %865 = vmatprep.subr.mxu0 0.0
        %866 = vmatpush1.msra.mxu0 %v310
        %867 = vmatprep.subr.mxu0 0.0
        %868 = vmatpush1.msra.mxu0 %v311
        %869 = vmatprep.subr.mxu0 0.0
        %870 = vmatpush1.msra.mxu0 0.0
        %871 = vmatprep.subr.mxu0 0.0
        %872 = vmatpush1.msra.mxu0 0.0
        %873 = vmatprep.subr.mxu0 0.0
        %874 = vmatpush1.msra.mxu0 0.0
        %875 = vmatprep.subr.mxu0 0.0
        %876 = vmatpush1.msra.mxu0 0.0
        %877 = vmatprep.subr.mxu0 0.0
        %878 = vmatpush1.msra.mxu0 0.0
        %879 = vmatprep.subr.mxu0 0.0
        %880 = vmatpush1.msra.mxu0 0.0
        %881 = vmatprep.subr.mxu0 0.0
        %882 = vmatpush1.msra.mxu0 0.0
        %883 = vmatprep.subr.mxu0 0.0
        %884 = vmatpush1.msra.mxu0 0.0
        %885 = vmatprep.subr.mxu0 0.0
        %886 = vmatpush1.msra.mxu0 0.0
        %887 = vmatprep.subr.mxu0 0.0
        %888 = vmatpush1.msra.mxu0 0.0
        %889 = vmatprep.subr.mxu0 0.0
        %890 = vmatpush1.msra.mxu0 0.0
        %891 = vmatprep.subr.mxu0 0.0
        %892 = vmatpush1.msra.mxu0 0.0
        %893 = vmatprep.subr.mxu0 0.0
        %894 = vmatpush1.msra.mxu0 0.0
        %895 = vmatprep.subr.mxu0 0.0
        %896 = vmatpush1.msra.mxu0 0.0
        %897 = vmatprep.subr.mxu0 0.0
        %898 = vmatpush1.msra.mxu0 0.0
        %899 = vmatprep.subr.mxu0 0.0
        %900 = vmatpush1.msra.mxu0 0.0
        %901 = vmatprep.subr.mxu0 0.0
        %902 = vmatpush1.msra.mxu0 0.0
        %903 = vmatprep.subr.mxu0 0.0
        %904 = vmatpush1.msra.mxu0 0.0
        %905 = vmatprep.subr.mxu0 0.0
        %906 = vmatpush1.msra.mxu0 0.0
        %907 = vmatprep.subr.mxu0 0.0
        %908 = vmatpush1.msra.mxu0 0.0
        %909 = vmatprep.subr.mxu0 0.0
        %910 = vmatpush1.msra.mxu0 0.0
        %911 = vmatprep.subr.mxu0 0.0
        %912 = vmatpush1.msra.mxu0 0.0
        %913 = vmatprep.subr.mxu0 0.0
        %914 = vmatpush1.msra.mxu0 0.0
        %915 = vmatprep.subr.mxu0 0.0
        %916 = vmatpush1.msra.mxu0 0.0
        %917 = vmatprep.subr.mxu0 0.0
        %918 = vmatpush1.msra.mxu0 0.0
        %919 = vmatprep.subr.mxu0 0.0
        %920 = vmatpush1.msra.mxu0 0.0
        %921 = vmatprep.subr.mxu0 0.0
        %922 = vmatpush1.msra.mxu0 0.0
        %923 = vmatprep.subr.mxu0 0.0
        %924 = vmatpush1.msra.mxu0 0.0
        %925 = vmatprep.mubr.f32.mxu0 0.0
        %926 = vmatmul.mubr.f32.gmra.mrb[0].mxu0 %v859
        %v927 = vpop.f32.mrb[0].mxu0
        %v928 = vadd.f32 0.0, %v927
        %v929 = vpop.f32.mrb[0].mxu0
        %930 = vdwg.mxu0
        %v931 = vadd.f32 %v856, %v928
        %v932 = vld [vmem:[#allocation4] sm:$0x3]
        %v933 = vmul.f32 %v854, 0.5
        %v934 = vtanh.pop %v933
        %v935 = vmul.f32 %v934, 0.5
        %v936 = vadd.f32 %v935, 0.5
        %v937 = vtanh.pop %v854
        %939 = vrot.lane.b32.xlu0 %v932, 32
        %v940 = vpop.permute.xlu0 %939
        %v942 = vmul.f32 %v936, %v940
        %944 = vrot.lane.b32.xlu0 %v937, 64
        %v945 = vpop.permute.xlu0 %944
        %v947 = vmul.f32 %v936, %v945
        %949 = vrot.lane.b32.xlu0 %v947, 32
        %v950 = vpop.permute.xlu0 %949
        %v952 = vadd.f32 %v942, %v950
        %v953 = vtanh.pop %v952
        %955 = vrot.lane.b32.xlu0 %v953, 64
        %v956 = vpop.permute.xlu0 %955
        %v958 = vmul.f32 %v936, %v956
        %v959 = vld [vmem:[%s494] sm:$0x3]
        %v960 = vmul.f32 %v931, 0.5
        %v961 = vtanh.pop %v960
        %v962 = vmul.f32 %v961, 0.5
        %v963 = vadd.f32 %v962, 0.5
        %v964 = vtanh.pop %v931
        %966 = vrot.lane.b32.xlu0 %v959, 32
        %v967 = vpop.permute.xlu0 %966
        %v969 = vmul.f32 %v963, %v967
        %971 = vrot.lane.b32.xlu0 %v964, 64
        %v972 = vpop.permute.xlu0 %971
        %v974 = vmul.f32 %v963, %v972
        %976 = vrot.lane.b32.xlu0 %v974, 32
        %v977 = vpop.permute.xlu0 %976
        %v979 = vadd.f32 %v969, %v977
        %v980 = vtanh.pop %v979
        %982 = vrot.lane.b32.xlu0 %v980, 64
        %v983 = vpop.permute.xlu0 %982
        %v985 = vmul.f32 %v963, %v983
        %987 = vrot.lane.b32.xlu0 %v952, 96
        %v988 = vpop.permute.xlu0 %987
        %990 = vst.msk [vmem:[#allocation4] sm:$0x3] %vm526, %v988
        %992 = vrot.lane.b32.xlu0 %v979, 96
        %v993 = vpop.permute.xlu0 %992
        %995 = vst.msk [vmem:[%s494] sm:$0x3] %vm526, %v993
        %997 = vrot.lane.b32.xlu0 %v958, 32
        %v998 = vpop.permute.xlu0 %997
        %1000 = vst.msk [vmem:[#allocation3] sm:$0x3] %vm526, %v998
        %1002 = vrot.lane.b32.xlu0 %v985, 32
        %v1003 = vpop.permute.xlu0 %1002
        %1005 = vst.msk [vmem:[%s391] sm:$0x3] %vm526, %v1003
        %s1006 = scalar_lea.vmem %s265, 4 [#allocation11]
        %1007 = vst.msk [vmem:[%s1006] sm:$0x3] %vm526, %v998
        %s1008 = scalar_lea.vmem %s272, 2 [#allocation12]
        %1009 = vst.msk [vmem:[%s1008] sm:$0x3] %vm526, %v1003
        %s1010 = scalar_lea.vmem %s231, 6 [#allocation6]
        %v1011 = vld [vmem:[%s1010] sm:$0x3]
        %v1012 = vld [vmem:[#allocation3] sm:$0x3]
        %v1014 = vsel %vm314, %v1012, 0
        %1016 = vmatprep.subr.mxu0 0.0
        %1017 = vmatpush1.msra.mxu0 %v303
        %1018 = vmatprep.subr.mxu0 0.0
        %1019 = vmatpush1.msra.mxu0 %v304
        %1020 = vmatprep.subr.mxu0 0.0
        %1021 = vmatpush1.msra.mxu0 %v305
        %1022 = vmatprep.subr.mxu0 0.0
        %1023 = vmatpush1.msra.mxu0 %v306
        %1024 = vmatprep.subr.mxu0 0.0
        %1025 = vmatpush1.msra.mxu0 0.0
        %1026 = vmatprep.subr.mxu0 0.0
        %1027 = vmatpush1.msra.mxu0 0.0
        %1028 = vmatprep.subr.mxu0 0.0
        %1029 = vmatpush1.msra.mxu0 0.0
        %1030 = vmatprep.subr.mxu0 0.0
        %1031 = vmatpush1.msra.mxu0 0.0
        %1032 = vmatprep.subr.mxu0 0.0
        %1033 = vmatpush1.msra.mxu0 0.0
        %1034 = vmatprep.subr.mxu0 0.0
        %1035 = vmatpush1.msra.mxu0 0.0
        %1036 = vmatprep.subr.mxu0 0.0
        %1037 = vmatpush1.msra.mxu0 0.0
        %1038 = vmatprep.subr.mxu0 0.0
        %1039 = vmatpush1.msra.mxu0 0.0
        %1040 = vmatprep.subr.mxu0 0.0
        %1041 = vmatpush1.msra.mxu0 0.0
        %1042 = vmatprep.subr.mxu0 0.0
        %1043 = vmatpush1.msra.mxu0 0.0
        %1044 = vmatprep.subr.mxu0 0.0
        %1045 = vmatpush1.msra.mxu0 0.0
        %1046 = vmatprep.subr.mxu0 0.0
        %1047 = vmatpush1.msra.mxu0 0.0
        %1048 = vmatprep.subr.mxu0 0.0
        %1049 = vmatpush1.msra.mxu0 0.0
        %1050 = vmatprep.subr.mxu0 0.0
        %1051 = vmatpush1.msra.mxu0 0.0
        %1052 = vmatprep.subr.mxu0 0.0
        %1053 = vmatpush1.msra.mxu0 0.0
        %1054 = vmatprep.subr.mxu0 0.0
        %1055 = vmatpush1.msra.mxu0 0.0
        %1056 = vmatprep.subr.mxu0 0.0
        %1057 = vmatpush1.msra.mxu0 0.0
        %1058 = vmatprep.subr.mxu0 0.0
        %1059 = vmatpush1.msra.mxu0 0.0
        %1060 = vmatprep.subr.mxu0 0.0
        %1061 = vmatpush1.msra.mxu0 0.0
        %1062 = vmatprep.subr.mxu0 0.0
        %1063 = vmatpush1.msra.mxu0 0.0
        %1064 = vmatprep.subr.mxu0 0.0
        %1065 = vmatpush1.msra.mxu0 0.0
        %1066 = vmatprep.subr.mxu0 0.0
        %1067 = vmatpush1.msra.mxu0 0.0
        %1068 = vmatprep.subr.mxu0 0.0
        %1069 = vmatpush1.msra.mxu0 0.0
        %1070 = vmatprep.subr.mxu0 0.0
        %1071 = vmatpush1.msra.mxu0 0.0
        %1072 = vmatprep.subr.mxu0 0.0
        %1073 = vmatpush1.msra.mxu0 0.0
        %1074 = vmatprep.subr.mxu0 0.0
        %1075 = vmatpush1.msra.mxu0 0.0
        %1076 = vmatprep.subr.mxu0 0.0
        %1077 = vmatpush1.msra.mxu0 0.0
        %1078 = vmatprep.subr.mxu0 0.0
        %1079 = vmatpush1.msra.mxu0 0.0
        %1080 = vmatprep.mubr.f32.mxu0 0.0
        %1081 = vmatmul.mubr.f32.gmra.mrb[0].mxu0 %v1014
        %v1082 = vpop.f32.mrb[0].mxu0
        %v1083 = vadd.f32 0.0, %v1082
        %v1084 = vpop.f32.mrb[0].mxu0
        %1085 = vdwg.mxu0
        %v1086 = vadd.f32 %v1011, %v1083
        %v1087 = vld [vmem:[%s240] sm:$0x3]
        %v1088 = vld [vmem:[%s391] sm:$0x3]
        %v1090 = vsel %vm314, %v1088, 0
        %1092 = vmatprep.subr.mxu0 0.0
        %1093 = vmatpush1.msra.mxu0 %v308
        %1094 = vmatprep.subr.mxu0 0.0
        %1095 = vmatpush1.msra.mxu0 %v309
        %1096 = vmatprep.subr.mxu0 0.0
        %1097 = vmatpush1.msra.mxu0 %v310
        %1098 = vmatprep.subr.mxu0 0.0
        %1099 = vmatpush1.msra.mxu0 %v311
        %1100 = vmatprep.subr.mxu0 0.0
        %1101 = vmatpush1.msra.mxu0 0.0
        %1102 = vmatprep.subr.mxu0 0.0
        %1103 = vmatpush1.msra.mxu0 0.0
        %1104 = vmatprep.subr.mxu0 0.0
        %1105 = vmatpush1.msra.mxu0 0.0
        %1106 = vmatprep.subr.mxu0 0.0
        %1107 = vmatpush1.msra.mxu0 0.0
        %1108 = vmatprep.subr.mxu0 0.0
        %1109 = vmatpush1.msra.mxu0 0.0
        %1110 = vmatprep.subr.mxu0 0.0
        %1111 = vmatpush1.msra.mxu0 0.0
        %1112 = vmatprep.subr.mxu0 0.0
        %1113 = vmatpush1.msra.mxu0 0.0
        %1114 = vmatprep.subr.mxu0 0.0
        %1115 = vmatpush1.msra.mxu0 0.0
        %1116 = vmatprep.subr.mxu0 0.0
        %1117 = vmatpush1.msra.mxu0 0.0
        %1118 = vmatprep.subr.mxu0 0.0
        %1119 = vmatpush1.msra.mxu0 0.0
        %1120 = vmatprep.subr.mxu0 0.0
        %1121 = vmatpush1.msra.mxu0 0.0
        %1122 = vmatprep.subr.mxu0 0.0
        %1123 = vmatpush1.msra.mxu0 0.0
        %1124 = vmatprep.subr.mxu0 0.0
        %1125 = vmatpush1.msra.mxu0 0.0
        %1126 = vmatprep.subr.mxu0 0.0
        %1127 = vmatpush1.msra.mxu0 0.0
        %1128 = vmatprep.subr.mxu0 0.0
        %1129 = vmatpush1.msra.mxu0 0.0
        %1130 = vmatprep.subr.mxu0 0.0
        %1131 = vmatpush1.msra.mxu0 0.0
        %1132 = vmatprep.subr.mxu0 0.0
        %1133 = vmatpush1.msra.mxu0 0.0
        %1134 = vmatprep.subr.mxu0 0.0
        %1135 = vmatpush1.msra.mxu0 0.0
        %1136 = vmatprep.subr.mxu0 0.0
        %1137 = vmatpush1.msra.mxu0 0.0
        %1138 = vmatprep.subr.mxu0 0.0
        %1139 = vmatpush1.msra.mxu0 0.0
        %1140 = vmatprep.subr.mxu0 0.0
        %1141 = vmatpush1.msra.mxu0 0.0
        %1142 = vmatprep.subr.mxu0 0.0
        %1143 = vmatpush1.msra.mxu0 0.0
        %1144 = vmatprep.subr.mxu0 0.0
        %1145 = vmatpush1.msra.mxu0 0.0
        %1146 = vmatprep.subr.mxu0 0.0
        %1147 = vmatpush1.msra.mxu0 0.0
        %1148 = vmatprep.subr.mxu0 0.0
        %1149 = vmatpush1.msra.mxu0 0.0
        %1150 = vmatprep.subr.mxu0 0.0
        %1151 = vmatpush1.msra.mxu0 0.0
        %1152 = vmatprep.subr.mxu0 0.0
        %1153 = vmatpush1.msra.mxu0 0.0
        %1154 = vmatprep.subr.mxu0 0.0
        %1155 = vmatpush1.msra.mxu0 0.0
        %1156 = vmatprep.mubr.f32.mxu0 0.0
        %1157 = vmatmul.mubr.f32.gmra.mrb[0].mxu0 %v1090
        %v1158 = vpop.f32.mrb[0].mxu0
        %v1159 = vadd.f32 0.0, %v1158
        %v1160 = vpop.f32.mrb[0].mxu0
        %1161 = vdwg.mxu0
        %v1162 = vadd.f32 %v1087, %v1159
        %v1163 = vld [vmem:[#allocation4] sm:$0x3]
        %v1164 = vmul.f32 %v1086, 0.5
        %v1165 = vtanh.pop %v1164
        %v1166 = vmul.f32 %v1165, 0.5
        %v1167 = vadd.f32 %v1166, 0.5
        %v1168 = vtanh.pop %v1086
        %1170 = vrot.lane.b32.xlu0 %v1163, 32
        %v1171 = vpop.permute.xlu0 %1170
        %v1173 = vmul.f32 %v1167, %v1171
        %1175 = vrot.lane.b32.xlu0 %v1168, 64
        %v1176 = vpop.permute.xlu0 %1175
        %v1178 = vmul.f32 %v1167, %v1176
        %1180 = vrot.lane.b32.xlu0 %v1178, 32
        %v1181 = vpop.permute.xlu0 %1180
        %v1183 = vadd.f32 %v1173, %v1181
        %v1184 = vtanh.pop %v1183
        %1186 = vrot.lane.b32.xlu0 %v1184, 64
        %v1187 = vpop.permute.xlu0 %1186
        %v1189 = vmul.f32 %v1167, %v1187
        %v1190 = vld [vmem:[%s494] sm:$0x3]
        %v1191 = vmul.f32 %v1162, 0.5
        %v1192 = vtanh.pop %v1191
        %v1193 = vmul.f32 %v1192, 0.5
        %v1194 = vadd.f32 %v1193, 0.5
        %v1195 = vtanh.pop %v1162
        %1197 = vrot.lane.b32.xlu0 %v1190, 32
        %v1198 = vpop.permute.xlu0 %1197
        %v1200 = vmul.f32 %v1194, %v1198
        %1202 = vrot.lane.b32.xlu0 %v1195, 64
        %v1203 = vpop.permute.xlu0 %1202
        %v1205 = vmul.f32 %v1194, %v1203
        %1207 = vrot.lane.b32.xlu0 %v1205, 32
        %v1208 = vpop.permute.xlu0 %1207
        %v1210 = vadd.f32 %v1200, %v1208
        %v1211 = vtanh.pop %v1210
        %1213 = vrot.lane.b32.xlu0 %v1211, 64
        %v1214 = vpop.permute.xlu0 %1213
        %v1216 = vmul.f32 %v1194, %v1214
        %1218 = vrot.lane.b32.xlu0 %v1183, 96
        %v1219 = vpop.permute.xlu0 %1218
        %1221 = vst.msk [vmem:[#allocation4] sm:$0x3] %vm526, %v1219
        %1223 = vrot.lane.b32.xlu0 %v1210, 96
        %v1224 = vpop.permute.xlu0 %1223
        %1226 = vst.msk [vmem:[%s494] sm:$0x3] %vm526, %v1224
        %1228 = vrot.lane.b32.xlu0 %v1189, 32
        %v1229 = vpop.permute.xlu0 %1228
        %1231 = vst.msk [vmem:[#allocation3] sm:$0x3] %vm526, %v1229
        %1233 = vrot.lane.b32.xlu0 %v1216, 32
        %v1234 = vpop.permute.xlu0 %1233
        %1236 = vst.msk [vmem:[%s391] sm:$0x3] %vm526, %v1234
        %s1237 = scalar_lea.vmem %s265, 6 [#allocation11]
        %1238 = vst.msk [vmem:[%s1237] sm:$0x3] %vm526, %v1229
        %1239 = vst.msk [vmem:[%s272] sm:$0x3] %vm526, %v1234
        %s1240 = sand.u32 %s108, 1
        %s1241 = scalar_lea.sflag [#allocation8], %s1240
        %s1242 = sand.u32 %s108, 1
        %s1243 = smul.addr %s1242, 8
        %s1244 = scalar_lea.vmem [#allocation11], %s1243
        %s1245 = sand.u32 %s138, 1
        %s1246 = scalar_lea.sflag [#allocation13], %s1245
        %s1247 = sand.u32 %s138, 1
        %s1248 = smul.addr %s1247, 8
        %s1249 = scalar_lea.vmem [#allocation12], %s1248
        // Predicated region
        $region45: #{tpu_custom_call.1} parent=27 // pred_check
          %p1250 = pneg %p118
        $region46: #{tpu_custom_call.1} parent=27 // pred_check_branch
          %1252 = sbr.rel (%p1250) target = $region48
        $region47: #{tpu_custom_call.1} parent=27 // pred_region
          %s1253 = smul.u32 4, %s33
          %s1255 = ssub.s32 128, 128
          %1256 = vsyncadd %s1241, %s1255
          %s1257 = sadd.s32 %s32, %s1253
          %s1258 = smul.addr %s1257, 32
          %s1259 = scalar_lea.hbm %s3, %s1258
          %s1260 = sshll.u32 %s1244, 4
          %s1261 = int_to_ptr.vmem [resolvable:$true] %s1260
          %1266 = dma.vmem_to_hbm [thread:$0]  %s1261, 128, %s1259, %s1241, 32, 32, 2
        $region48: #{tpu_custom_call.1} parent=27 // pred_fallthru
          _
        // Predicated region
        $region49: #{tpu_custom_call.1} parent=27 // pred_check
          %p1267 = pneg %p148
        $region50: #{tpu_custom_call.1} parent=27 // pred_check_branch
          %1269 = sbr.rel (%p1267) target = $region52
        $region51: #{tpu_custom_call.1} parent=27 // pred_region
          %s1270 = ssub.s32 1, %s33
          %s1271 = smul.u32 4, %s1270
          %s1273 = ssub.s32 128, 128
          %1274 = vsyncadd %s1246, %s1273
          %s1275 = sadd.s32 %s32, %s1271
          %s1276 = smul.addr %s1275, 32
          %s1277 = scalar_lea.hbm %s4, %s1276
          %s1278 = sshll.u32 %s1249, 4
          %s1279 = int_to_ptr.vmem [resolvable:$true] %s1278
          %1284 = dma.vmem_to_hbm [thread:$0]  %s1279, 128, %s1277, %s1246, 32, 32, 2
        $region52: #{tpu_custom_call.1} parent=27 // pred_fallthru
          _
      $region28: #{tpu_custom_call.1} parent=5 // pred_fallthru
        _
      %p1285 = scmp.le.s32.totalorder 2, %s23
      // Predicated region
      $region53: #{tpu_custom_call.1} parent=5 // pred_check
        %p1286 = pneg %p1285
      $region54: #{tpu_custom_call.1} parent=5 // pred_check_branch
        %1288 = sbr.rel (%p1286) target = $region56
      $region55: #{tpu_custom_call.1} parent=5 // pred_region
        %s1289 = ssub.s32 %s23, 2
        // Predicated region
        $region57: #{tpu_custom_call.1} parent=55 // pred_check
          %p1290 = pneg %p124
        $region58: #{tpu_custom_call.1} parent=55 // pred_check_branch
          %1292 = sbr.rel (%p1290) target = $region60
        $region59: #{tpu_custom_call.1} parent=55 // pred_region
          %s1293 = sand.u32 %s109, 1
          %s1294 = scalar_lea.sflag [#allocation8], %s1293
          %s1295 = sand.u32 %s109, 1
          %s1296 = smul.addr %s1295, 8
          %s1297 = scalar_lea.vmem [#allocation11], %s1296
          %1298 = dma.done %s1294, 128
        $region60: #{tpu_custom_call.1} parent=55 // pred_fallthru
          _
        // Predicated region
        $region61: #{tpu_custom_call.1} parent=55 // pred_check
          %p1299 = pneg %p154
        $region62: #{tpu_custom_call.1} parent=55 // pred_check_branch
          %1301 = sbr.rel (%p1299) target = $region64
        $region63: #{tpu_custom_call.1} parent=55 // pred_region
          %s1302 = sand.u32 %s139, 1
          %s1303 = scalar_lea.sflag [#allocation13], %s1302
          %s1304 = sand.u32 %s139, 1
          %s1305 = smul.addr %s1304, 8
          %s1306 = scalar_lea.vmem [#allocation12], %s1305
          %1307 = dma.done %s1303, 128
        $region64: #{tpu_custom_call.1} parent=55 // pred_fallthru
          _
      $region56: #{tpu_custom_call.1} parent=5 // pred_fallthru
        _
    $region6: #{tpu_custom_call.1} parent=1 // loop_footer
      %s27 = sadd.s32 1, %s23
    $region7: #{tpu_custom_call.1} parent=1 // loop_footer_branch
      %22 = sbr.rel target = $region3
    $region8: #{tpu_custom_call.1} parent=1 // loop_exit
      _
    %1308 = vsyncpa [#allocation7], 1
    %s1309 = scalar_lea.sflag [#allocation7], 1
    %1310 = vsyncpa %s1309, 1
    %1311 = vsyncpa [#allocation10], 1
    %s1312 = scalar_lea.sflag [#allocation10], 1
    %1313 = vsyncpa %s1312, 1
    %1314 = vsyncpa [#allocation8], 1
    %s1315 = scalar_lea.sflag [#allocation8], 1
    %1316 = vsyncpa %s1315, 1
    %1317 = vsyncpa [#allocation13], 1
    %s1318 = scalar_lea.sflag [#allocation13], 1
    %1319 = vsyncpa %s1318, 1
  %1320 = vsyncmov [#allocation5]
  %s1321 = vpop.sfrf %1320
  %p1322 = scmp.eq.s32.totalorder %s1321, 0
  %p1323 = pneg %p1322
  %1325 = shalt.err (%p1323)

</llo_original>
